<compile_context>
chip_gen: v7x
topology: tpu7x:2x2x1
jax: 0.10.0
libtpu: 0.0.40
codegen_flags: <defaults>
</compile_context>

<pallas_src>
import jax
import jax.numpy as jnp
from jax.experimental import pallas as pl
from jax.experimental.pallas import tpu as pltpu

LANE = 128
SUBLANE = 8


def _round_up(n: int, m: int) -> int:
    return ((n + m - 1) // m) * m


def _round_down(n: int, m: int) -> int:
    return (n // m) * m


def _vmem_capacity_bytes() -> int:
    """Physical per-core VMEM (128 MiB on v5e/v6e, 64 MiB per TC on v7x)."""
    try:
        return int(pltpu.get_tpu_info().vmem_capacity_bytes)
    except Exception:
        return 128 * 1024 * 1024


def _vreg_tile_bytes(rows: int, cols: int, itemsize: int) -> int:
    """VMEM footprint of a (rows, cols) buffer after (8/16, 128) tile padding."""
    sub = SUBLANE * max(1, 4 // itemsize)
    return _round_up(max(rows, 1), sub) * _round_up(max(cols, 1), LANE) * itemsize


def _make_mlp_kernel(num_hidden: int):
    """Fused MLP kernel: num_hidden x (Linear+ReLU) then Linear(dh -> 1).

    All tensors are in transposed layout: activations are (features, tile_b).
    """

    def kernel(*refs):
        # refs = [x_ref, (w_i, b_i) * num_hidden, wf_col, bf_smem, o_ref]
        x_ref = refs[0]
        o_ref = refs[-1]
        p = refs[1:-1]

        h = x_ref[...]
        h_f32 = h.astype(jnp.float32)            # used directly if num_hidden == 0
        h_bf16 = h.astype(jnp.bfloat16)          # MXU operand for the first layer

        for i in range(num_hidden):
            w = p[2 * i][...]                    # bf16 (out_pad, in_pad)
            b = p[2 * i + 1][...]                # f32  (out_pad, 1)
            # MXU: bf16 operands, f32 accumulation; bias/ReLU in f32 (v5e-safe).
            z = jnp.dot(w, h_bf16, preferred_element_type=jnp.float32) + b
            h_f32 = jnp.maximum(z, 0.0)
            h_bf16 = h_f32.astype(jnp.bfloat16)  # operand for the next MXU pass

        wf = p[2 * num_hidden][...]              # f32 (dh_pad, 1)
        bf = p[2 * num_hidden + 1][0, 0]         # f32 scalar, read from SMEM
        # Final Linear(dh -> 1): VPU multiply + sublane reduction; the
        # (1, tile_b) row is lane-dense so stores are unmasked.
        # NOTE: padded batch columns carry relu(bias)-derived garbage; the
        # wrapper strips them, and nothing in the kernel reduces over batch.
        o_ref[...] = jnp.sum(h_f32 * wf, axis=0, keepdims=True) + bf

    return kernel


def deep_nn_forward(x, params, *, tile_b=None, single_buffer_weights=True):
    """Forward pass of DeepNN (equivalent of `network(x).squeeze()`).

    x:      (B, d) float32.
    params: list of (W, b) in PyTorch nn.Linear layout (W: (out, in), b: (out,));
            the last pair is the final Linear with out == 1.
    tile_b: batch tile (multiple of 128); None -> derived from the VMEM budget.
    """
    B, d = x.shape
    num_hidden = len(params) - 1

    # ---- padded feature sizes ---------------------------------------------
    dims = [d] + [w.shape[0] for (w, _) in params[:num_hidden]]
    dims_pad = [_round_up(v, LANE) for v in dims]
    d_pad, dh_pad = dims_pad[0], dims_pad[-1]
    max_feat_pad = max(dims_pad)

    # ---- VMEM budget + batch tiling (per-generation, not hard-coded) -------
    cap = _vmem_capacity_bytes()
    b128 = _round_up(B, LANE)
    nbuf_w = 1 if single_buffer_weights else 2

    weight_bytes = nbuf_w * _vreg_tile_bytes(dh_pad, 1, 4)
    for li in range(num_hidden):
        weight_bytes += nbuf_w * (
            _vreg_tile_bytes(dims_pad[li + 1], dims_pad[li], 2)
            + _vreg_tile_bytes(dims_pad[li + 1], 1, 4))

    def _footprint(tb):
        io = 2 * _vreg_tile_bytes(d_pad, tb, 2) + 2 * _vreg_tile_bytes(1, tb, 4)
        act = 3 * max_feat_pad * tb * 4          # f32/bf16 activation temporaries
        return weight_bytes + io + act

    if tile_b is None:
        # 128-MiB parts (v5e/v6e) can afford 1024-wide batch tiles; 64-MiB v7x
        # starts at 512 and relies on >=2 grid steps to use both TensorCores.
        tile_b = 1024 if cap >= (96 << 20) else 512
    tile_b = max(LANE, _round_up(min(tile_b, b128), LANE))
    if b128 >= 2 * LANE:
        # Keep at least two grid steps so the "parallel" axis can shard across
        # v7x's two TensorCores instead of idling one of them.
        tile_b = min(tile_b, max(LANE, _round_down(b128 // 2, LANE)))
    while tile_b > LANE and _footprint(tile_b) > int(cap * 0.6):
        tile_b -= LANE

    b_pad = _round_up(B, tile_b)
    num_tiles = b_pad // tile_b

    # Scoped-VMEM limit: actual need plus margin for Mosaic internal scratch,
    # capped at 7/8 of physical VMEM (~56 MiB on v7x, ~112 MiB on v5e/v6e).
    vmem_limit = max(2 * _footprint(tile_b) + (8 << 20), 32 << 20)
    vmem_limit = min(vmem_limit, _round_down((cap * 7) // 8, 1024))

    # ---- padded, transposed operands (built directly in kernel dtypes) -----
    x_dtype = jnp.float32 if num_hidden == 0 else jnp.bfloat16
    x_t = (jnp.zeros((d_pad, b_pad), x_dtype)
           .at[:d, :B].set(x.T.astype(x_dtype)))   # single pad/transpose pass

    def _const_spec(shape):
        """Constant-index operand: single-buffered (no pointless double buffer)."""
        idx = lambda i: (0,) * len(shape)
        if single_buffer_weights:
            try:
                return pl.BlockSpec(shape, idx, pipeline_mode=pl.Buffered(1))
            except TypeError:          # jax without BlockSpec.pipeline_mode
                pass
        return pl.BlockSpec(shape, idx)

    flat = [x_t]
    in_specs = [pl.BlockSpec((d_pad, tile_b), lambda i: (0, i))]

    for li in range(num_hidden):
        w, b = params[li]
        out_dim, in_dim = w.shape
        out_p, in_p = dims_pad[li + 1], dims_pad[li]
        w_p = (jnp.zeros((out_p, in_p), jnp.bfloat16)
               .at[:out_dim, :in_dim].set(w.astype(jnp.bfloat16)))
        b_p = jnp.zeros((out_p, 1), jnp.float32).at[:out_dim, 0].set(b)
        flat += [w_p, b_p]
        in_specs += [_const_spec((out_p, in_p)), _const_spec((out_p, 1))]

    wf, bfin = params[-1]                          # wf: (1, dh), bfin: (1,)
    dh = wf.shape[1]
    wf_col = jnp.zeros((dh_pad, 1), jnp.float32).at[:dh, 0].set(wf[0])
    bf_11 = jnp.asarray(bfin, jnp.float32).reshape(1, 1)
    flat += [wf_col, bf_11]
    in_specs += [_const_spec((dh_pad, 1)),
                 pl.BlockSpec(memory_space=pltpu.SMEM)]   # scalar bias in SMEM

    # ---- advisory cost estimate ---------------------------------------------
    flops = 2 * b_pad * dh_pad
    for li in range(num_hidden):
        flops += 2 * b_pad * dims_pad[li] * dims_pad[li + 1]
    bytes_accessed = sum(int(a.size) * a.dtype.itemsize for a in flat) + b_pad * 4
    cost = pl.CostEstimate(flops=int(flops), transcendentals=0,
                           bytes_accessed=int(bytes_accessed))

    out = pl.pallas_call(
        _make_mlp_kernel(num_hidden),
        out_shape=jax.ShapeDtypeStruct((1, b_pad), jnp.float32),
        grid_spec=pltpu.PrefetchScalarGridSpec(
            num_scalar_prefetch=0,
            grid=(num_tiles,),
            in_specs=in_specs,
            out_specs=pl.BlockSpec((1, tile_b), lambda i: (0, i)),
        ),
        compiler_params=pltpu.CompilerParams(
            dimension_semantics=("parallel",),
            vmem_limit_bytes=int(vmem_limit),
        ),
        cost_estimate=cost,
    )(*flat)

    # Strip batch padding; match torch's .squeeze() (scalar if B == 1).
    return jnp.squeeze(out[0, :B])


def init_deep_nn_params(key, d, hidden_dims):
    """Matches DeepNN.__init__ (PyTorch nn.Linear layout: W (out, in), b (out,)).
       hidden: W ~ N(0, (sqrt(2)/sqrt(fan_in))^2), b = 0
       final:  W ~ N(0, 0.01^2), b = 0."""
    params = []
    prev = d
    gain = 2.0 ** 0.5                              # nn.init.calculate_gain('relu')
    for h in hidden_dims:
        key, k = jax.random.split(key)
        std = gain / (prev ** 0.5)
        w = jax.random.normal(k, (h, prev), jnp.float32) * std
        b = jnp.zeros((h,), jnp.float32)
        params.append((w, b))
        prev = h
    key, k = jax.random.split(key)
    wf = jax.random.normal(k, (1, prev), jnp.float32) * 0.01
    bf = jnp.zeros((1,), jnp.float32)
    params.append((wf, bf))
    return params


def reference_forward(x, params):
    """Pure-JAX reference with the kernel's numerics (bf16 MXU operands, f32 accum).
    For strict f32 parity with PyTorch, keep all operands f32 in the kernel."""
    h = x.astype(jnp.float32)
    for (w, b) in params[:-1]:
        z = jnp.dot(h.astype(jnp.bfloat16), w.T.astype(jnp.bfloat16),
                    preferred_element_type=jnp.float32) + b
        h = jnp.maximum(z, 0.0)
    wf, bf = params[-1]
    out = jnp.dot(h, wf[0].astype(jnp.float32)) + bf[0]
    return jnp.squeeze(out)


if __name__ == "__main__":
    key = jax.random.PRNGKey(0)
    d = 16
    hidden_dims = [32, 32]

    kx, kx2, kp = jax.random.split(key, 3)
    params = init_deep_nn_params(kp, d, hidden_dims)

    fwd = jax.jit(deep_nn_forward,
                  static_argnames=("tile_b", "single_buffer_weights"))

    def run(xin, **kw):
        try:
            return jax.block_until_ready(fwd(xin, params, **kw))
        except Exception:
            # Fallback for jax/Mosaic versions that reject single-buffered
            # (pipeline_mode=pl.Buffered(1)) operands: retry double-buffered.
            return jax.block_until_ready(
                fwd(xin, params, single_buffer_weights=False, **kw))

    # Small case matching the toy module sizes.
    B = 8
    x = jax.random.normal(kx, (B, d), dtype=jnp.float32)
    y = run(x)
    y_ref = reference_forward(x, params)
    assert y.shape == (B,), f"unexpected output shape {y.shape}"
    assert jnp.allclose(y, y_ref, atol=1e-3, rtol=1e-3), "mismatch vs reference"

    # Batch not divisible by 128: exercises padding plus a >=2-step grid
    # (the auto tiler clamps tile_b so v7x can shard tiles over both TCs).
    B2 = 200
    x2 = jax.random.normal(kx2, (B2, d), dtype=jnp.float32)
    y2 = run(x2)
    y2_ref = reference_forward(x2, params)
    assert y2.shape == (B2,), f"unexpected output shape {y2.shape}"
    assert jnp.allclose(y2, y2_ref, atol=1e-3, rtol=1e-3), "mismatch vs reference (tiled)"

    print("KERNEL_OK")
</pallas_src>

<mosaic_0001>
module attributes {stable_mosaic.version = 11 : i64} {
  func.func @kernel(%arg0: i32, %arg1: memref<128x128xbf16, #tpu.memory_space<vmem>>, %arg2: memref<128x128xbf16, #tpu.memory_space<vmem>>, %arg3: memref<128x1xf32, #tpu.memory_space<vmem>>, %arg4: memref<128x128xbf16, #tpu.memory_space<vmem>>, %arg5: memref<128x1xf32, #tpu.memory_space<vmem>>, %arg6: memref<128x1xf32, #tpu.memory_space<vmem>>, %arg7: memref<1x1xf32, #tpu.memory_space<smem>>, %arg8: memref<1x128xf32, #tpu.memory_space<vmem>>) attributes {dimension_semantics = [#tpu.dimension_semantics<parallel>], iteration_bounds = array<i64: 1>, scalar_prefetch = 0 : i64, scratch_operands = 0 : i64, tpu.core_type = #tpu.core_type<tc>, window_params = [{transform_indices = @transform_0, window_bounds = array<i64: 128, 128>}, {pipeline_mode = #tpu.pipeline_mode<synchronous>, transform_indices = @transform_1, window_bounds = array<i64: 128, 128>}, {pipeline_mode = #tpu.pipeline_mode<synchronous>, transform_indices = @transform_2, window_bounds = array<i64: 128, 1>}, {pipeline_mode = #tpu.pipeline_mode<synchronous>, transform_indices = @transform_3, window_bounds = array<i64: 128, 128>}, {pipeline_mode = #tpu.pipeline_mode<synchronous>, transform_indices = @transform_4, window_bounds = array<i64: 128, 1>}, {pipeline_mode = #tpu.pipeline_mode<synchronous>, transform_indices = @transform_5, window_bounds = array<i64: 128, 1>}, {transform_indices = @transform_6, window_bounds = array<i64: 1, 1>}, {transform_indices = @transform_7, window_bounds = array<i64: 1, 128>}]} {
    %c0 = arith.constant 0 : index
    %c0_0 = arith.constant 0 : index
    %0 = vector.load %arg1[%c0, %c0_0] : memref<128x128xbf16, #tpu.memory_space<vmem>>, vector<128x128xbf16>
    %c0_1 = arith.constant 0 : index
    %c0_2 = arith.constant 0 : index
    %1 = vector.load %arg2[%c0_1, %c0_2] : memref<128x128xbf16, #tpu.memory_space<vmem>>, vector<128x128xbf16>
    %c0_3 = arith.constant 0 : index
    %c0_4 = arith.constant 0 : index
    %2 = vector.load %arg3[%c0_3, %c0_4] : memref<128x1xf32, #tpu.memory_space<vmem>>, vector<128x1xf32>
    %cst = arith.constant dense<0.000000e+00> : vector<128x128xf32>
    %3 = tpu.matmul %1, %0, %cst {dimension_numbers = #tpu.dot_dimension_numbers<[1], [0], [0], [1], [0, 0, 1, 1], [], []>} : vector<128x128xbf16>, vector<128x128xbf16>, vector<128x128xf32> -> vector<128x128xf32>
    %4 = vector.broadcast %2 : vector<128x1xf32> to vector<128x128xf32>
    %5 = arith.addf %3, %4 : vector<128x128xf32>
    %cst_5 = arith.constant 0.000000e+00 : f32
    %6 = vector.broadcast %cst_5 : f32 to vector<128x128xf32>
    %7 = arith.maximumf %5, %6 : vector<128x128xf32>
    %8 = arith.truncf %7 : vector<128x128xf32> to vector<128x128xbf16>
    %c0_6 = arith.constant 0 : index
    %c0_7 = arith.constant 0 : index
    %9 = vector.load %arg4[%c0_6, %c0_7] : memref<128x128xbf16, #tpu.memory_space<vmem>>, vector<128x128xbf16>
    %c0_8 = arith.constant 0 : index
    %c0_9 = arith.constant 0 : index
    %10 = vector.load %arg5[%c0_8, %c0_9] : memref<128x1xf32, #tpu.memory_space<vmem>>, vector<128x1xf32>
    %cst_10 = arith.constant dense<0.000000e+00> : vector<128x128xf32>
    %11 = tpu.matmul %9, %8, %cst_10 {dimension_numbers = #tpu.dot_dimension_numbers<[1], [0], [0], [1], [0, 0, 1, 1], [], []>} : vector<128x128xbf16>, vector<128x128xbf16>, vector<128x128xf32> -> vector<128x128xf32>
    %12 = vector.broadcast %10 : vector<128x1xf32> to vector<128x128xf32>
    %13 = arith.addf %11, %12 : vector<128x128xf32>
    %cst_11 = arith.constant 0.000000e+00 : f32
    %14 = vector.broadcast %cst_11 : f32 to vector<128x128xf32>
    %15 = arith.maximumf %13, %14 : vector<128x128xf32>
    %c0_12 = arith.constant 0 : index
    %c0_13 = arith.constant 0 : index
    %16 = vector.load %arg6[%c0_12, %c0_13] : memref<128x1xf32, #tpu.memory_space<vmem>>, vector<128x1xf32>
    %c0_14 = arith.constant 0 : index
    %c0_15 = arith.constant 0 : index
    %17 = memref.load %arg7[%c0_14, %c0_15] : memref<1x1xf32, #tpu.memory_space<smem>>
    %18 = vector.broadcast %16 : vector<128x1xf32> to vector<128x128xf32>
    %19 = arith.mulf %15, %18 : vector<128x128xf32>
    %cst_16 = arith.constant dense<0.000000e+00> : vector<128xf32>
    %20 = vector.multi_reduction <add>, %19, %cst_16 [0] : vector<128x128xf32> to vector<128xf32>
    %21 = vector.shape_cast %20 : vector<128xf32> to vector<1x128xf32>
    %22 = vector.broadcast %17 : f32 to vector<1x128xf32>
    %23 = arith.addf %21, %22 : vector<1x128xf32>
    %c0_17 = arith.constant 0 : index
    %c0_18 = arith.constant 0 : index
    %24 = vector.load %arg8[%c0_17, %c0_18] : memref<1x128xf32, #tpu.memory_space<vmem>>, vector<1x128xf32>
    tpu.vector_store %arg8[%c0_17, %c0_18], %23 {strides = array<i32>} : memref<1x128xf32, #tpu.memory_space<vmem>>, vector<1x128xf32>,
    return
  }
  func.func @transform_0(%arg0: i32) -> (i32, i32) {
    %c0_i32 = arith.constant 0 : i32
    %c0_i32_0 = arith.constant 0 : i32
    return %c0_i32, %arg0 : i32, i32
  }
  func.func @transform_1(%arg0: i32) -> (i32, i32) {
    %c0_i32 = arith.constant 0 : i32
    %c0_i32_0 = arith.constant 0 : i32
    %c0_i32_1 = arith.constant 0 : i32
    return %c0_i32, %c0_i32_0 : i32, i32
  }
  func.func @transform_2(%arg0: i32) -> (i32, i32) {
    %c0_i32 = arith.constant 0 : i32
    %c0_i32_0 = arith.constant 0 : i32
    %c0_i32_1 = arith.constant 0 : i32
    return %c0_i32, %c0_i32_0 : i32, i32
  }
  func.func @transform_3(%arg0: i32) -> (i32, i32) {
    %c0_i32 = arith.constant 0 : i32
    %c0_i32_0 = arith.constant 0 : i32
    %c0_i32_1 = arith.constant 0 : i32
    return %c0_i32, %c0_i32_0 : i32, i32
  }
  func.func @transform_4(%arg0: i32) -> (i32, i32) {
    %c0_i32 = arith.constant 0 : i32
    %c0_i32_0 = arith.constant 0 : i32
    %c0_i32_1 = arith.constant 0 : i32
    return %c0_i32, %c0_i32_0 : i32, i32
  }
  func.func @transform_5(%arg0: i32) -> (i32, i32) {
    %c0_i32 = arith.constant 0 : i32
    %c0_i32_0 = arith.constant 0 : i32
    %c0_i32_1 = arith.constant 0 : i32
    return %c0_i32, %c0_i32_0 : i32, i32
  }
  func.func @transform_6(%arg0: i32) -> (i32, i32) {
    %c0_i32 = arith.constant 0 : i32
    %c0_i32_0 = arith.constant 0 : i32
    %c0_i32_1 = arith.constant 0 : i32
    return %c0_i32, %c0_i32_0 : i32, i32
  }
  func.func @transform_7(%arg0: i32) -> (i32, i32) {
    %c0_i32 = arith.constant 0 : i32
    %c0_i32_0 = arith.constant 0 : i32
    return %c0_i32, %arg0 : i32, i32
  }
}

module attributes {stable_mosaic.version = 11 : i64} {
  func.func @kernel(%arg0: i32, %arg1: memref<128x128xbf16, #tpu.memory_space<vmem>>, %arg2: memref<128x128xbf16, #tpu.memory_space<vmem>>, %arg3: memref<128x1xf32, #tpu.memory_space<vmem>>, %arg4: memref<128x128xbf16, #tpu.memory_space<vmem>>, %arg5: memref<128x1xf32, #tpu.memory_space<vmem>>, %arg6: memref<128x1xf32, #tpu.memory_space<vmem>>, %arg7: memref<1x1xf32, #tpu.memory_space<smem>>, %arg8: memref<1x128xf32, #tpu.memory_space<vmem>>) attributes {dimension_semantics = [#tpu.dimension_semantics<parallel>], iteration_bounds = array<i64: 1>, scalar_prefetch = 0 : i64, scratch_operands = 0 : i64, tpu.core_type = #tpu.core_type<tc>, window_params = [{transform_indices = @transform_0, window_bounds = array<i64: 128, 128>}, {pipeline_mode = #tpu.pipeline_mode<synchronous>, transform_indices = @transform_1, window_bounds = array<i64: 128, 128>}, {pipeline_mode = #tpu.pipeline_mode<synchronous>, transform_indices = @transform_2, window_bounds = array<i64: 128, 1>}, {pipeline_mode = #tpu.pipeline_mode<synchronous>, transform_indices = @transform_3, window_bounds = array<i64: 128, 128>}, {pipeline_mode = #tpu.pipeline_mode<synchronous>, transform_indices = @transform_4, window_bounds = array<i64: 128, 1>}, {pipeline_mode = #tpu.pipeline_mode<synchronous>, transform_indices = @transform_5, window_bounds = array<i64: 128, 1>}, {transform_indices = @transform_6, window_bounds = array<i64: 1, 1>}, {transform_indices = @transform_7, window_bounds = array<i64: 1, 128>}]} {
    %c0 = arith.constant 0 : index
    %c0_0 = arith.constant 0 : index
    %0 = vector.load %arg1[%c0, %c0_0] : memref<128x128xbf16, #tpu.memory_space<vmem>>, vector<128x128xbf16>
    %c0_1 = arith.constant 0 : index
    %c0_2 = arith.constant 0 : index
    %1 = vector.load %arg2[%c0_1, %c0_2] : memref<128x128xbf16, #tpu.memory_space<vmem>>, vector<128x128xbf16>
    %c0_3 = arith.constant 0 : index
    %c0_4 = arith.constant 0 : index
    %2 = vector.load %arg3[%c0_3, %c0_4] : memref<128x1xf32, #tpu.memory_space<vmem>>, vector<128x1xf32>
    %cst = arith.constant dense<0.000000e+00> : vector<128x128xf32>
    %3 = tpu.matmul %1, %0, %cst {dimension_numbers = #tpu.dot_dimension_numbers<[1], [0], [0], [1], [0, 0, 1, 1], [], []>} : vector<128x128xbf16>, vector<128x128xbf16>, vector<128x128xf32> -> vector<128x128xf32>
    %4 = vector.broadcast %2 : vector<128x1xf32> to vector<128x128xf32>
    %5 = arith.addf %3, %4 : vector<128x128xf32>
    %cst_5 = arith.constant 0.000000e+00 : f32
    %6 = vector.broadcast %cst_5 : f32 to vector<128x128xf32>
    %7 = arith.maximumf %5, %6 : vector<128x128xf32>
    %8 = arith.truncf %7 : vector<128x128xf32> to vector<128x128xbf16>
    %c0_6 = arith.constant 0 : index
    %c0_7 = arith.constant 0 : index
    %9 = vector.load %arg4[%c0_6, %c0_7] : memref<128x128xbf16, #tpu.memory_space<vmem>>, vector<128x128xbf16>
    %c0_8 = arith.constant 0 : index
    %c0_9 = arith.constant 0 : index
    %10 = vector.load %arg5[%c0_8, %c0_9] : memref<128x1xf32, #tpu.memory_space<vmem>>, vector<128x1xf32>
    %cst_10 = arith.constant dense<0.000000e+00> : vector<128x128xf32>
    %11 = tpu.matmul %9, %8, %cst_10 {dimension_numbers = #tpu.dot_dimension_numbers<[1], [0], [0], [1], [0, 0, 1, 1], [], []>} : vector<128x128xbf16>, vector<128x128xbf16>, vector<128x128xf32> -> vector<128x128xf32>
    %12 = vector.broadcast %10 : vector<128x1xf32> to vector<128x128xf32>
    %13 = arith.addf %11, %12 : vector<128x128xf32>
    %cst_11 = arith.constant 0.000000e+00 : f32
    %14 = vector.broadcast %cst_11 : f32 to vector<128x128xf32>
    %15 = arith.maximumf %13, %14 : vector<128x128xf32>
    %c0_12 = arith.constant 0 : index
    %c0_13 = arith.constant 0 : index
    %16 = vector.load %arg6[%c0_12, %c0_13] : memref<128x1xf32, #tpu.memory_space<vmem>>, vector<128x1xf32>
    %c0_14 = arith.constant 0 : index
    %c0_15 = arith.constant 0 : index
    %17 = memref.load %arg7[%c0_14, %c0_15] : memref<1x1xf32, #tpu.memory_space<smem>>
    %18 = vector.broadcast %16 : vector<128x1xf32> to vector<128x128xf32>
    %19 = arith.mulf %15, %18 : vector<128x128xf32>
    %cst_16 = arith.constant dense<0.000000e+00> : vector<128xf32>
    %20 = vector.multi_reduction <add>, %19, %cst_16 [0] : vector<128x128xf32> to vector<128xf32>
    %21 = vector.shape_cast %20 : vector<128xf32> to vector<1x128xf32>
    %22 = vector.broadcast %17 : f32 to vector<1x128xf32>
    %23 = arith.addf %21, %22 : vector<1x128xf32>
    %c0_17 = arith.constant 0 : index
    %c0_18 = arith.constant 0 : index
    %24 = vector.load %arg8[%c0_17, %c0_18] : memref<1x128xf32, #tpu.memory_space<vmem>>, vector<1x128xf32>
    tpu.vector_store %arg8[%c0_17, %c0_18], %23 {strides = array<i32>} : memref<1x128xf32, #tpu.memory_space<vmem>>, vector<1x128xf32>,
    return
  }
  func.func @transform_0(%arg0: i32) -> (i32, i32) {
    %c0_i32 = arith.constant 0 : i32
    %c0_i32_0 = arith.constant 0 : i32
    return %c0_i32, %arg0 : i32, i32
  }
  func.func @transform_1(%arg0: i32) -> (i32, i32) {
    %c0_i32 = arith.constant 0 : i32
    %c0_i32_0 = arith.constant 0 : i32
    %c0_i32_1 = arith.constant 0 : i32
    return %c0_i32, %c0_i32_0 : i32, i32
  }
  func.func @transform_2(%arg0: i32) -> (i32, i32) {
    %c0_i32 = arith.constant 0 : i32
    %c0_i32_0 = arith.constant 0 : i32
    %c0_i32_1 = arith.constant 0 : i32
    return %c0_i32, %c0_i32_0 : i32, i32
  }
  func.func @transform_3(%arg0: i32) -> (i32, i32) {
    %c0_i32 = arith.constant 0 : i32
    %c0_i32_0 = arith.constant 0 : i32
    %c0_i32_1 = arith.constant 0 : i32
    return %c0_i32, %c0_i32_0 : i32, i32
  }
  func.func @transform_4(%arg0: i32) -> (i32, i32) {
    %c0_i32 = arith.constant 0 : i32
    %c0_i32_0 = arith.constant 0 : i32
    %c0_i32_1 = arith.constant 0 : i32
    return %c0_i32, %c0_i32_0 : i32, i32
  }
  func.func @transform_5(%arg0: i32) -> (i32, i32) {
    %c0_i32 = arith.constant 0 : i32
    %c0_i32_0 = arith.constant 0 : i32
    %c0_i32_1 = arith.constant 0 : i32
    return %c0_i32, %c0_i32_0 : i32, i32
  }
  func.func @transform_6(%arg0: i32) -> (i32, i32) {
    %c0_i32 = arith.constant 0 : i32
    %c0_i32_0 = arith.constant 0 : i32
    %c0_i32_1 = arith.constant 0 : i32
    return %c0_i32, %c0_i32_0 : i32, i32
  }
  func.func @transform_7(%arg0: i32) -> (i32, i32) {
    %c0_i32 = arith.constant 0 : i32
    %c0_i32_0 = arith.constant 0 : i32
    return %c0_i32, %arg0 : i32, i32
  }
}

</mosaic_0001>

<llo_original>
// kernel: deep_nn_forward.1
$region0: #{deep_nn_forward.1}
  #allocation0 [shape = 'u32[]', space=smem, size = 0x4, offset = 0x4, fixed_abs, tag = 'smem constant byte address 0x4 - core index']
  #allocation1 [shape = 'u32[144,128]{1,0:T(1,128)}', space=vmem, size = 0x12000, scoped, tag = 'internal scratch']
  #allocation2 [shape = 'f32[1,1]{1,0:T(1,128)S(6)}', space=smem, size = 0x200, scoped, tag = 'scoped memory for deep_nn_forward.1']
  %s0 = inlined_call_operand.vmem [shape: bf16[128,128], index: 0, kind: input, shape index: {}]
  %s1 = inlined_call_operand.vmem [shape: bf16[128,128], index: 1, kind: input, shape index: {}]
  %s2 = inlined_call_operand.vmem [shape: f32[128,1], index: 2, kind: input, shape index: {}]
  %s3 = inlined_call_operand.vmem [shape: bf16[128,128], index: 3, kind: input, shape index: {}]
  %s4 = inlined_call_operand.vmem [shape: f32[128,1], index: 4, kind: input, shape index: {}]
  %s5 = inlined_call_operand.vmem [shape: f32[128,1], index: 5, kind: input, shape index: {}]
  %s6 = inlined_call_operand.<no memory space> [shape: f32[1,1], index: 6, kind: input, shape index: {}]
  %s7 = inlined_call_operand.vmem [shape: f32[1,128], index: 7, kind: output, shape index: {}]
  %s8 = sld [smem:[#allocation0]]
  $region38: #{deep_nn_forward.1} parent=0
    _
  %s10 = ssub.s32 1, %s8
  %s11 = scalar_select 0, %s10, %s8
  %12 = sst [smem:[#allocation2]] %s6
  // Predicated region
  $region2: #{deep_nn_forward.1} parent=0 // pred_check
    _
  $region3: #{deep_nn_forward.1} parent=0 // pred_check_branch
    %14 = sbr.rel (0) target = $region5
  $region4: #{deep_nn_forward.1} parent=0 // pred_region
    _
  $region5: #{deep_nn_forward.1} parent=0 // pred_fallthru
    _
  // Predicated region
  $region6: #{deep_nn_forward.1} parent=0 // pred_check
    _
  $region7: #{deep_nn_forward.1} parent=0 // pred_check_branch
    %16 = sbr.rel (0) target = $region9
  $region8: #{deep_nn_forward.1} parent=0 // pred_region
    _
  $region9: #{deep_nn_forward.1} parent=0 // pred_fallthru
    _
  // Predicated region
  $region10: #{deep_nn_forward.1} parent=0 // pred_check
    _
  $region11: #{deep_nn_forward.1} parent=0 // pred_check_branch
    %18 = sbr.rel (0) target = $region13
  $region12: #{deep_nn_forward.1} parent=0 // pred_region
    _
  $region13: #{deep_nn_forward.1} parent=0 // pred_fallthru
    _
  // Predicated region
  $region14: #{deep_nn_forward.1} parent=0 // pred_check
    _
  $region15: #{deep_nn_forward.1} parent=0 // pred_check_branch
    %20 = sbr.rel (0) target = $region17
  $region16: #{deep_nn_forward.1} parent=0 // pred_region
    _
  $region17: #{deep_nn_forward.1} parent=0 // pred_fallthru
    _
  // Predicated region
  $region18: #{deep_nn_forward.1} parent=0 // pred_check
    _
  $region19: #{deep_nn_forward.1} parent=0 // pred_check_branch
    %22 = sbr.rel (0) target = $region21
  $region20: #{deep_nn_forward.1} parent=0 // pred_region
    _
  $region21: #{deep_nn_forward.1} parent=0 // pred_fallthru
    _
  // Predicated region
  $region22: #{deep_nn_forward.1} parent=0 // pred_check
    _
  $region23: #{deep_nn_forward.1} parent=0 // pred_check_branch
    %24 = sbr.rel (0) target = $region25
  $region24: #{deep_nn_forward.1} parent=0 // pred_region
    _
  $region25: #{deep_nn_forward.1} parent=0 // pred_fallthru
    _
  // Predicated region
  $region26: #{deep_nn_forward.1} parent=0 // pred_check
    _
  $region27: #{deep_nn_forward.1} parent=0 // pred_check_branch
    %26 = sbr.rel (0) target = $region29
  $region28: #{deep_nn_forward.1} parent=0 // pred_region
    _
  $region29: #{deep_nn_forward.1} parent=0 // pred_fallthru
    _
  %v28 = vld [vmem:[%s0] sm:$0xf]
  %v29 = vld [vmem:[%s0 + $0x4] sm:$0xf]
  %v30 = vld [vmem:[%s0 + $0x8] sm:$0xf]
  %v31 = vld [vmem:[%s0 + $0xc] sm:$0xf]
  %v32 = vld [vmem:[%s0 + $0x10] sm:$0xf]
  %v33 = vld [vmem:[%s0 + $0x14] sm:$0xf]
  %v34 = vld [vmem:[%s0 + $0x18] sm:$0xf]
  %v35 = vld [vmem:[%s0 + $0x1c] sm:$0xf]
  %v36 = vld [vmem:[%s0 + $0x20] sm:$0xf]
  %v37 = vld [vmem:[%s0 + $0x24] sm:$0xf]
  %v38 = vld [vmem:[%s0 + $0x28] sm:$0xf]
  %v39 = vld [vmem:[%s0 + $0x2c] sm:$0xf]
  %v40 = vld [vmem:[%s0 + $0x30] sm:$0xf]
  %v41 = vld [vmem:[%s0 + $0x34] sm:$0xf]
  %v42 = vld [vmem:[%s0 + $0x38] sm:$0xf]
  %v43 = vld [vmem:[%s0 + $0x3c] sm:$0xf]
  %v44 = vld [vmem:[%s1] sm:$0xf]
  %v45 = vld [vmem:[%s1 + $0x4] sm:$0xf]
  %v46 = vld [vmem:[%s1 + $0x8] sm:$0xf]
  %v47 = vld [vmem:[%s1 + $0xc] sm:$0xf]
  %v48 = vld [vmem:[%s1 + $0x10] sm:$0xf]
  %v49 = vld [vmem:[%s1 + $0x14] sm:$0xf]
  %v50 = vld [vmem:[%s1 + $0x18] sm:$0xf]
  %v51 = vld [vmem:[%s1 + $0x1c] sm:$0xf]
  %v52 = vld [vmem:[%s1 + $0x20] sm:$0xf]
  %v53 = vld [vmem:[%s1 + $0x24] sm:$0xf]
  %v54 = vld [vmem:[%s1 + $0x28] sm:$0xf]
  %v55 = vld [vmem:[%s1 + $0x2c] sm:$0xf]
  %v56 = vld [vmem:[%s1 + $0x30] sm:$0xf]
  %v57 = vld [vmem:[%s1 + $0x34] sm:$0xf]
  %v58 = vld [vmem:[%s1 + $0x38] sm:$0xf]
  %v59 = vld [vmem:[%s1 + $0x3c] sm:$0xf]
  %v60 = vld [vmem:[%s2] sm:$0xff]
  %v61 = vld [vmem:[%s2 + $0x8] sm:$0xff]
  %v62 = vld [vmem:[%s2 + $0x10] sm:$0xff]
  %v63 = vld [vmem:[%s2 + $0x18] sm:$0xff]
  %v64 = vld [vmem:[%s2 + $0x20] sm:$0xff]
  %v65 = vld [vmem:[%s2 + $0x28] sm:$0xff]
  %v66 = vld [vmem:[%s2 + $0x30] sm:$0xff]
  %v67 = vld [vmem:[%s2 + $0x38] sm:$0xff]
  %v68 = vld [vmem:[%s2 + $0x40] sm:$0xff]
  %v69 = vld [vmem:[%s2 + $0x48] sm:$0xff]
  %v70 = vld [vmem:[%s2 + $0x50] sm:$0xff]
  %v71 = vld [vmem:[%s2 + $0x58] sm:$0xff]
  %v72 = vld [vmem:[%s2 + $0x60] sm:$0xff]
  %v73 = vld [vmem:[%s2 + $0x68] sm:$0xff]
  %v74 = vld [vmem:[%s2 + $0x70] sm:$0xff]
  %v75 = vld [vmem:[%s2 + $0x78] sm:$0xff]
  %77 = vset.pattern.permute.xlu0 0
  %78 = vperm.xlu0 %77, %v60
  %v79 = vpop.permute.xlu0 %78
  %82 = vset.pattern.permute.xlu0 0
  %83 = vperm.xlu0 %82, %v61
  %v84 = vpop.permute.xlu0 %83
  %87 = vset.pattern.permute.xlu0 0
  %88 = vperm.xlu0 %87, %v62
  %v89 = vpop.permute.xlu0 %88
  %92 = vset.pattern.permute.xlu0 0
  %93 = vperm.xlu0 %92, %v63
  %v94 = vpop.permute.xlu0 %93
  %97 = vset.pattern.permute.xlu0 0
  %98 = vperm.xlu0 %97, %v64
  %v99 = vpop.permute.xlu0 %98
  %102 = vset.pattern.permute.xlu0 0
  %103 = vperm.xlu0 %102, %v65
  %v104 = vpop.permute.xlu0 %103
  %107 = vset.pattern.permute.xlu0 0
  %108 = vperm.xlu0 %107, %v66
  %v109 = vpop.permute.xlu0 %108
  %112 = vset.pattern.permute.xlu0 0
  %113 = vperm.xlu0 %112, %v67
  %v114 = vpop.permute.xlu0 %113
  %117 = vset.pattern.permute.xlu0 0
  %118 = vperm.xlu0 %117, %v68
  %v119 = vpop.permute.xlu0 %118
  %122 = vset.pattern.permute.xlu0 0
  %123 = vperm.xlu0 %122, %v69
  %v124 = vpop.permute.xlu0 %123
  %127 = vset.pattern.permute.xlu0 0
  %128 = vperm.xlu0 %127, %v70
  %v129 = vpop.permute.xlu0 %128
  %132 = vset.pattern.permute.xlu0 0
  %133 = vperm.xlu0 %132, %v71
  %v134 = vpop.permute.xlu0 %133
  %137 = vset.pattern.permute.xlu0 0
  %138 = vperm.xlu0 %137, %v72
  %v139 = vpop.permute.xlu0 %138
  %142 = vset.pattern.permute.xlu0 0
  %143 = vperm.xlu0 %142, %v73
  %v144 = vpop.permute.xlu0 %143
  %147 = vset.pattern.permute.xlu0 0
  %148 = vperm.xlu0 %147, %v74
  %v149 = vpop.permute.xlu0 %148
  %152 = vset.pattern.permute.xlu0 0
  %153 = vperm.xlu0 %152, %v75
  %v154 = vpop.permute.xlu0 %153
  %v172 = vunpack.c.l.b16 %v44
  %v173 = vunpack.c.l.b16 %v45
  %v174 = vunpack.c.l.b16 %v46
  %v175 = vunpack.c.l.b16 %v47
  %v176 = vunpack.c.l.b16 %v48
  %v177 = vunpack.c.l.b16 %v49
  %v178 = vunpack.c.l.b16 %v50
  %v179 = vunpack.c.l.b16 %v51
  %v180 = vunpack.c.l.b16 %v52
  %v181 = vunpack.c.l.b16 %v53
  %v182 = vunpack.c.l.b16 %v54
  %v183 = vunpack.c.l.b16 %v55
  %v184 = vunpack.c.l.b16 %v56
  %v185 = vunpack.c.l.b16 %v57
  %v186 = vunpack.c.l.b16 %v58
  %v187 = vunpack.c.l.b16 %v59
  %v188 = vpack.c.b16 %v173, %v172
  %v189 = vpack.c.b16 %v175, %v174
  %v190 = vpack.c.b16 %v177, %v176
  %v191 = vpack.c.b16 %v179, %v178
  %v192 = vpack.c.b16 %v181, %v180
  %v193 = vpack.c.b16 %v183, %v182
  %v194 = vpack.c.b16 %v185, %v184
  %v195 = vpack.c.b16 %v187, %v186
  %v220 = vunpack.c.l.b16 %v28
  %v221 = vunpack.c.l.b16 %v29
  %v222 = vunpack.c.l.b16 %v30
  %v223 = vunpack.c.l.b16 %v31
  %v224 = vunpack.c.l.b16 %v32
  %v225 = vunpack.c.l.b16 %v33
  %v226 = vunpack.c.l.b16 %v34
  %v227 = vunpack.c.l.b16 %v35
  %v228 = vunpack.c.l.b16 %v36
  %v229 = vunpack.c.l.b16 %v37
  %v230 = vunpack.c.l.b16 %v38
  %v231 = vunpack.c.l.b16 %v39
  %v232 = vunpack.c.l.b16 %v40
  %v233 = vunpack.c.l.b16 %v41
  %v234 = vunpack.c.l.b16 %v42
  %v235 = vunpack.c.l.b16 %v43
  %v236 = vpack.c.b16 %v221, %v220
  %v237 = vpack.c.b16 %v223, %v222
  %v238 = vpack.c.b16 %v225, %v224
  %v239 = vpack.c.b16 %v227, %v226
  %v240 = vpack.c.b16 %v229, %v228
  %v241 = vpack.c.b16 %v231, %v230
  %v242 = vpack.c.b16 %v233, %v232
  %v243 = vpack.c.b16 %v235, %v234
  %252 = vmatprep.subr.bf16.mxu0 0
  %253 = vmatpush1.bf16.msra.mxu0 %v236
  %254 = vmatprep.subr.bf16.mxu0 0
  %255 = vmatpush1.bf16.msra.mxu0 %v237
  %256 = vmatprep.subr.bf16.mxu0 0
  %257 = vmatpush1.bf16.msra.mxu0 %v238
  %258 = vmatprep.subr.bf16.mxu0 0
  %259 = vmatpush1.bf16.msra.mxu0 %v239
  %260 = vmatprep.subr.bf16.mxu0 0
  %261 = vmatpush1.bf16.msra.mxu0 %v240
  %262 = vmatprep.subr.bf16.mxu0 0
  %263 = vmatpush1.bf16.msra.mxu0 %v241
  %264 = vmatprep.subr.bf16.mxu0 0
  %265 = vmatpush1.bf16.msra.mxu0 %v242
  %266 = vmatprep.subr.bf16.mxu0 0
  %267 = vmatpush1.bf16.msra.mxu0 %v243
  %268 = vmatprep.subr.bf16.mxu0 0
  %269 = vmatpush1.bf16.msra.mxu0 0
  %270 = vmatprep.subr.bf16.mxu0 0
  %271 = vmatpush1.bf16.msra.mxu0 0
  %272 = vmatprep.subr.bf16.mxu0 0
  %273 = vmatpush1.bf16.msra.mxu0 0
  %274 = vmatprep.subr.bf16.mxu0 0
  %275 = vmatpush1.bf16.msra.mxu0 0
  %276 = vmatprep.subr.bf16.mxu0 0
  %277 = vmatpush1.bf16.msra.mxu0 0
  %278 = vmatprep.subr.bf16.mxu0 0
  %279 = vmatpush1.bf16.msra.mxu0 0
  %280 = vmatprep.subr.bf16.mxu0 0
  %281 = vmatpush1.bf16.msra.mxu0 0
  %282 = vmatprep.subr.bf16.mxu0 0
  %283 = vmatpush1.bf16.msra.mxu0 0
  %284 = vmatprep.mubr.bf16.mxu0 0
  %285 = vmatmul.mubr.bf16.gmra.mrb[0].mxu0 %v188
  %v286 = vpop.f32.mrb[0].mxu0
  %v287 = vadd.f32 %v79, %v286
  %v288 = vpop.f32.mrb[0].mxu0
  %v289 = vpop.f32.mrb[0].mxu0
  %v290 = vadd.f32 %v84, %v289
  %v291 = vpop.f32.mrb[0].mxu0
  %292 = vmatprep.mubr.bf16.mxu0 0
  %293 = vmatmul.mubr.bf16.gmra.mrb[0].mxu0 %v189
  %v294 = vpop.f32.mrb[0].mxu0
  %v295 = vadd.f32 %v89, %v294
  %v296 = vpop.f32.mrb[0].mxu0
  %v297 = vpop.f32.mrb[0].mxu0
  %v298 = vadd.f32 %v94, %v297
  %v299 = vpop.f32.mrb[0].mxu0
  %300 = vmatprep.mubr.bf16.mxu0 0
  %301 = vmatmul.mubr.bf16.gmra.mrb[0].mxu0 %v190
  %v302 = vpop.f32.mrb[0].mxu0
  %v303 = vadd.f32 %v99, %v302
  %v304 = vpop.f32.mrb[0].mxu0
  %v305 = vpop.f32.mrb[0].mxu0
  %v306 = vadd.f32 %v104, %v305
  %v307 = vpop.f32.mrb[0].mxu0
  %308 = vmatprep.mubr.bf16.mxu0 0
  %309 = vmatmul.mubr.bf16.gmra.mrb[0].mxu0 %v191
  %v310 = vpop.f32.mrb[0].mxu0
  %v311 = vadd.f32 %v109, %v310
  %v312 = vpop.f32.mrb[0].mxu0
  %v313 = vpop.f32.mrb[0].mxu0
  %v314 = vadd.f32 %v114, %v313
  %v315 = vpop.f32.mrb[0].mxu0
  %316 = vmatprep.mubr.bf16.mxu0 0
  %317 = vmatmul.mubr.bf16.gmra.mrb[0].mxu0 %v192
  %v318 = vpop.f32.mrb[0].mxu0
  %v319 = vadd.f32 %v119, %v318
  %v320 = vpop.f32.mrb[0].mxu0
  %v321 = vpop.f32.mrb[0].mxu0
  %v322 = vadd.f32 %v124, %v321
  %v323 = vpop.f32.mrb[0].mxu0
  %324 = vmatprep.mubr.bf16.mxu0 0
  %325 = vmatmul.mubr.bf16.gmra.mrb[0].mxu0 %v193
  %v326 = vpop.f32.mrb[0].mxu0
  %v327 = vadd.f32 %v129, %v326
  %v328 = vpop.f32.mrb[0].mxu0
  %v329 = vpop.f32.mrb[0].mxu0
  %v330 = vadd.f32 %v134, %v329
  %v331 = vpop.f32.mrb[0].mxu0
  %332 = vmatprep.mubr.bf16.mxu0 0
  %333 = vmatmul.mubr.bf16.gmra.mrb[0].mxu0 %v194
  %v334 = vpop.f32.mrb[0].mxu0
  %v335 = vadd.f32 %v139, %v334
  %v336 = vpop.f32.mrb[0].mxu0
  %v337 = vpop.f32.mrb[0].mxu0
  %v338 = vadd.f32 %v144, %v337
  %v339 = vpop.f32.mrb[0].mxu0
  %340 = vmatprep.mubr.bf16.mxu0 0
  %341 = vmatmul.mubr.bf16.gmra.mrb[0].mxu0 %v195
  %v342 = vpop.f32.mrb[0].mxu0
  %v343 = vadd.f32 %v149, %v342
  %v344 = vpop.f32.mrb[0].mxu0
  %v345 = vpop.f32.mrb[0].mxu0
  %v346 = vadd.f32 %v154, %v345
  %v347 = vpop.f32.mrb[0].mxu0
  %348 = vdwg.mxu0
  %v349 = vmax.f32 %v287, 0.0
  %v350 = vmax.f32 %v290, 0.0
  %v351 = vmax.f32 %v295, 0.0
  %v352 = vmax.f32 %v298, 0.0
  %v353 = vmax.f32 %v303, 0.0
  %v354 = vmax.f32 %v306, 0.0
  %v355 = vmax.f32 %v311, 0.0
  %v356 = vmax.f32 %v314, 0.0
  %v357 = vmax.f32 %v319, 0.0
  %v358 = vmax.f32 %v322, 0.0
  %v359 = vmax.f32 %v327, 0.0
  %v360 = vmax.f32 %v330, 0.0
  %v361 = vmax.f32 %v335, 0.0
  %v362 = vmax.f32 %v338, 0.0
  %v363 = vmax.f32 %v343, 0.0
  %v364 = vmax.f32 %v346, 0.0
  %v365 = vpack.c.bf16 %v350, %v349
  %v366 = vpack.c.bf16 %v352, %v351
  %v367 = vpack.c.bf16 %v354, %v353
  %v368 = vpack.c.bf16 %v356, %v355
  %v369 = vpack.c.bf16 %v358, %v357
  %v370 = vpack.c.bf16 %v360, %v359
  %v371 = vpack.c.bf16 %v362, %v361
  %v372 = vpack.c.bf16 %v364, %v363
  %v373 = vld [vmem:[%s3] sm:$0xf]
  %v374 = vld [vmem:[%s3 + $0x4] sm:$0xf]
  %v375 = vld [vmem:[%s3 + $0x8] sm:$0xf]
  %v376 = vld [vmem:[%s3 + $0xc] sm:$0xf]
  %v377 = vld [vmem:[%s3 + $0x10] sm:$0xf]
  %v378 = vld [vmem:[%s3 + $0x14] sm:$0xf]
  %v379 = vld [vmem:[%s3 + $0x18] sm:$0xf]
  %v380 = vld [vmem:[%s3 + $0x1c] sm:$0xf]
  %v381 = vld [vmem:[%s3 + $0x20] sm:$0xf]
  %v382 = vld [vmem:[%s3 + $0x24] sm:$0xf]
  %v383 = vld [vmem:[%s3 + $0x28] sm:$0xf]
  %v384 = vld [vmem:[%s3 + $0x2c] sm:$0xf]
  %v385 = vld [vmem:[%s3 + $0x30] sm:$0xf]
  %v386 = vld [vmem:[%s3 + $0x34] sm:$0xf]
  %v387 = vld [vmem:[%s3 + $0x38] sm:$0xf]
  %v388 = vld [vmem:[%s3 + $0x3c] sm:$0xf]
  %v389 = vld [vmem:[%s4] sm:$0xff]
  %v390 = vld [vmem:[%s4 + $0x8] sm:$0xff]
  %v391 = vld [vmem:[%s4 + $0x10] sm:$0xff]
  %v392 = vld [vmem:[%s4 + $0x18] sm:$0xff]
  %v393 = vld [vmem:[%s4 + $0x20] sm:$0xff]
  %v394 = vld [vmem:[%s4 + $0x28] sm:$0xff]
  %v395 = vld [vmem:[%s4 + $0x30] sm:$0xff]
  %v396 = vld [vmem:[%s4 + $0x38] sm:$0xff]
  %v397 = vld [vmem:[%s4 + $0x40] sm:$0xff]
  %v398 = vld [vmem:[%s4 + $0x48] sm:$0xff]
  %v399 = vld [vmem:[%s4 + $0x50] sm:$0xff]
  %v400 = vld [vmem:[%s4 + $0x58] sm:$0xff]
  %v401 = vld [vmem:[%s4 + $0x60] sm:$0xff]
  %v402 = vld [vmem:[%s4 + $0x68] sm:$0xff]
  %v403 = vld [vmem:[%s4 + $0x70] sm:$0xff]
  %v404 = vld [vmem:[%s4 + $0x78] sm:$0xff]
  %406 = vset.pattern.permute.xlu0 0
  %407 = vperm.xlu0 %406, %v389
  %v408 = vpop.permute.xlu0 %407
  %411 = vset.pattern.permute.xlu0 0
  %412 = vperm.xlu0 %411, %v390
  %v413 = vpop.permute.xlu0 %412
  %416 = vset.pattern.permute.xlu0 0
  %417 = vperm.xlu0 %416, %v391
  %v418 = vpop.permute.xlu0 %417
  %421 = vset.pattern.permute.xlu0 0
  %422 = vperm.xlu0 %421, %v392
  %v423 = vpop.permute.xlu0 %422
  %426 = vset.pattern.permute.xlu0 0
  %427 = vperm.xlu0 %426, %v393
  %v428 = vpop.permute.xlu0 %427
  %431 = vset.pattern.permute.xlu0 0
  %432 = vperm.xlu0 %431, %v394
  %v433 = vpop.permute.xlu0 %432
  %436 = vset.pattern.permute.xlu0 0
  %437 = vperm.xlu0 %436, %v395
  %v438 = vpop.permute.xlu0 %437
  %441 = vset.pattern.permute.xlu0 0
  %442 = vperm.xlu0 %441, %v396
  %v443 = vpop.permute.xlu0 %442
  %446 = vset.pattern.permute.xlu0 0
  %447 = vperm.xlu0 %446, %v397
  %v448 = vpop.permute.xlu0 %447
  %451 = vset.pattern.permute.xlu0 0
  %452 = vperm.xlu0 %451, %v398
  %v453 = vpop.permute.xlu0 %452
  %456 = vset.pattern.permute.xlu0 0
  %457 = vperm.xlu0 %456, %v399
  %v458 = vpop.permute.xlu0 %457
  %461 = vset.pattern.permute.xlu0 0
  %462 = vperm.xlu0 %461, %v400
  %v463 = vpop.permute.xlu0 %462
  %466 = vset.pattern.permute.xlu0 0
  %467 = vperm.xlu0 %466, %v401
  %v468 = vpop.permute.xlu0 %467
  %471 = vset.pattern.permute.xlu0 0
  %472 = vperm.xlu0 %471, %v402
  %v473 = vpop.permute.xlu0 %472
  %476 = vset.pattern.permute.xlu0 0
  %477 = vperm.xlu0 %476, %v403
  %v478 = vpop.permute.xlu0 %477
  %481 = vset.pattern.permute.xlu0 0
  %482 = vperm.xlu0 %481, %v404
  %v483 = vpop.permute.xlu0 %482
  %v501 = vunpack.c.l.b16 %v373
  %v502 = vunpack.c.l.b16 %v374
  %v503 = vunpack.c.l.b16 %v375
  %v504 = vunpack.c.l.b16 %v376
  %v505 = vunpack.c.l.b16 %v377
  %v506 = vunpack.c.l.b16 %v378
  %v507 = vunpack.c.l.b16 %v379
  %v508 = vunpack.c.l.b16 %v380
  %v509 = vunpack.c.l.b16 %v381
  %v510 = vunpack.c.l.b16 %v382
  %v511 = vunpack.c.l.b16 %v383
  %v512 = vunpack.c.l.b16 %v384
  %v513 = vunpack.c.l.b16 %v385
  %v514 = vunpack.c.l.b16 %v386
  %v515 = vunpack.c.l.b16 %v387
  %v516 = vunpack.c.l.b16 %v388
  %v517 = vpack.c.b16 %v502, %v501
  %v518 = vpack.c.b16 %v504, %v503
  %v519 = vpack.c.b16 %v506, %v505
  %v520 = vpack.c.b16 %v508, %v507
  %v521 = vpack.c.b16 %v510, %v509
  %v522 = vpack.c.b16 %v512, %v511
  %v523 = vpack.c.b16 %v514, %v513
  %v524 = vpack.c.b16 %v516, %v515
  %533 = vmatprep.subr.bf16.mxu0 0
  %534 = vmatpush1.bf16.msra.mxu0 %v365
  %535 = vmatprep.subr.bf16.mxu0 0
  %536 = vmatpush1.bf16.msra.mxu0 %v366
  %537 = vmatprep.subr.bf16.mxu0 0
  %538 = vmatpush1.bf16.msra.mxu0 %v367
  %539 = vmatprep.subr.bf16.mxu0 0
  %540 = vmatpush1.bf16.msra.mxu0 %v368
  %541 = vmatprep.subr.bf16.mxu0 0
  %542 = vmatpush1.bf16.msra.mxu0 %v369
  %543 = vmatprep.subr.bf16.mxu0 0
  %544 = vmatpush1.bf16.msra.mxu0 %v370
  %545 = vmatprep.subr.bf16.mxu0 0
  %546 = vmatpush1.bf16.msra.mxu0 %v371
  %547 = vmatprep.subr.bf16.mxu0 0
  %548 = vmatpush1.bf16.msra.mxu0 %v372
  %549 = vmatprep.subr.bf16.mxu0 0
  %550 = vmatpush1.bf16.msra.mxu0 0
  %551 = vmatprep.subr.bf16.mxu0 0
  %552 = vmatpush1.bf16.msra.mxu0 0
  %553 = vmatprep.subr.bf16.mxu0 0
  %554 = vmatpush1.bf16.msra.mxu0 0
  %555 = vmatprep.subr.bf16.mxu0 0
  %556 = vmatpush1.bf16.msra.mxu0 0
  %557 = vmatprep.subr.bf16.mxu0 0
  %558 = vmatpush1.bf16.msra.mxu0 0
  %559 = vmatprep.subr.bf16.mxu0 0
  %560 = vmatpush1.bf16.msra.mxu0 0
  %561 = vmatprep.subr.bf16.mxu0 0
  %562 = vmatpush1.bf16.msra.mxu0 0
  %563 = vmatprep.subr.bf16.mxu0 0
  %564 = vmatpush1.bf16.msra.mxu0 0
  %565 = vmatprep.mubr.bf16.mxu0 0
  %566 = vmatmul.mubr.bf16.gmra.mrb[0].mxu0 %v517
  %v567 = vpop.f32.mrb[0].mxu0
  %v568 = vadd.f32 %v408, %v567
  %v569 = vpop.f32.mrb[0].mxu0
  %v570 = vpop.f32.mrb[0].mxu0
  %v571 = vadd.f32 %v413, %v570
  %v572 = vpop.f32.mrb[0].mxu0
  %573 = vmatprep.mubr.bf16.mxu0 0
  %574 = vmatmul.mubr.bf16.gmra.mrb[0].mxu0 %v518
  %v575 = vpop.f32.mrb[0].mxu0
  %v576 = vadd.f32 %v418, %v575
  %v577 = vpop.f32.mrb[0].mxu0
  %v578 = vpop.f32.mrb[0].mxu0
  %v579 = vadd.f32 %v423, %v578
  %v580 = vpop.f32.mrb[0].mxu0
  %581 = vmatprep.mubr.bf16.mxu0 0
  %582 = vmatmul.mubr.bf16.gmra.mrb[0].mxu0 %v519
  %v583 = vpop.f32.mrb[0].mxu0
  %v584 = vadd.f32 %v428, %v583
  %v585 = vpop.f32.mrb[0].mxu0
  %v586 = vpop.f32.mrb[0].mxu0
  %v587 = vadd.f32 %v433, %v586
  %v588 = vpop.f32.mrb[0].mxu0
  %589 = vmatprep.mubr.bf16.mxu0 0
  %590 = vmatmul.mubr.bf16.gmra.mrb[0].mxu0 %v520
  %v591 = vpop.f32.mrb[0].mxu0
  %v592 = vadd.f32 %v438, %v591
  %v593 = vpop.f32.mrb[0].mxu0
  %v594 = vpop.f32.mrb[0].mxu0
  %v595 = vadd.f32 %v443, %v594
  %v596 = vpop.f32.mrb[0].mxu0
  %597 = vmatprep.mubr.bf16.mxu0 0
  %598 = vmatmul.mubr.bf16.gmra.mrb[0].mxu0 %v521
  %v599 = vpop.f32.mrb[0].mxu0
  %v600 = vadd.f32 %v448, %v599
  %v601 = vpop.f32.mrb[0].mxu0
  %v602 = vpop.f32.mrb[0].mxu0
  %v603 = vadd.f32 %v453, %v602
  %v604 = vpop.f32.mrb[0].mxu0
  %605 = vmatprep.mubr.bf16.mxu0 0
  %606 = vmatmul.mubr.bf16.gmra.mrb[0].mxu0 %v522
  %v607 = vpop.f32.mrb[0].mxu0
  %v608 = vadd.f32 %v458, %v607
  %v609 = vpop.f32.mrb[0].mxu0
  %v610 = vpop.f32.mrb[0].mxu0
  %v611 = vadd.f32 %v463, %v610
  %v612 = vpop.f32.mrb[0].mxu0
  %613 = vmatprep.mubr.bf16.mxu0 0
  %614 = vmatmul.mubr.bf16.gmra.mrb[0].mxu0 %v523
  %v615 = vpop.f32.mrb[0].mxu0
  %v616 = vadd.f32 %v468, %v615
  %v617 = vpop.f32.mrb[0].mxu0
  %v618 = vpop.f32.mrb[0].mxu0
  %v619 = vadd.f32 %v473, %v618
  %v620 = vpop.f32.mrb[0].mxu0
  %621 = vmatprep.mubr.bf16.mxu0 0
  %622 = vmatmul.mubr.bf16.gmra.mrb[0].mxu0 %v524
  %v623 = vpop.f32.mrb[0].mxu0
  %v624 = vadd.f32 %v478, %v623
  %v625 = vpop.f32.mrb[0].mxu0
  %v626 = vpop.f32.mrb[0].mxu0
  %v627 = vadd.f32 %v483, %v626
  %v628 = vpop.f32.mrb[0].mxu0
  %629 = vdwg.mxu0
  %v630 = vmax.f32 %v568, 0.0
  %v631 = vmax.f32 %v571, 0.0
  %v632 = vmax.f32 %v576, 0.0
  %v633 = vmax.f32 %v579, 0.0
  %v634 = vmax.f32 %v584, 0.0
  %v635 = vmax.f32 %v587, 0.0
  %v636 = vmax.f32 %v592, 0.0
  %v637 = vmax.f32 %v595, 0.0
  %v638 = vmax.f32 %v600, 0.0
  %v639 = vmax.f32 %v603, 0.0
  %v640 = vmax.f32 %v608, 0.0
  %v641 = vmax.f32 %v611, 0.0
  %v642 = vmax.f32 %v616, 0.0
  %v643 = vmax.f32 %v619, 0.0
  %v644 = vmax.f32 %v624, 0.0
  %v645 = vmax.f32 %v627, 0.0
  %v646 = vld [vmem:[%s5] sm:$0xff]
  %v647 = vld [vmem:[%s5 + $0x8] sm:$0xff]
  %v648 = vld [vmem:[%s5 + $0x10] sm:$0xff]
  %v649 = vld [vmem:[%s5 + $0x18] sm:$0xff]
  %v650 = vld [vmem:[%s5 + $0x20] sm:$0xff]
  %v651 = vld [vmem:[%s5 + $0x28] sm:$0xff]
  %v652 = vld [vmem:[%s5 + $0x30] sm:$0xff]
  %v653 = vld [vmem:[%s5 + $0x38] sm:$0xff]
  %v654 = vld [vmem:[%s5 + $0x40] sm:$0xff]
  %v655 = vld [vmem:[%s5 + $0x48] sm:$0xff]
  %v656 = vld [vmem:[%s5 + $0x50] sm:$0xff]
  %v657 = vld [vmem:[%s5 + $0x58] sm:$0xff]
  %v658 = vld [vmem:[%s5 + $0x60] sm:$0xff]
  %v659 = vld [vmem:[%s5 + $0x68] sm:$0xff]
  %v660 = vld [vmem:[%s5 + $0x70] sm:$0xff]
  %v661 = vld [vmem:[%s5 + $0x78] sm:$0xff]
  %s662 = sld [smem:[#allocation2]]
  %664 = vset.pattern.permute.xlu0 0
  %665 = vperm.xlu0 %664, %v646
  %v666 = vpop.permute.xlu0 %665
  %669 = vset.pattern.permute.xlu0 0
  %670 = vperm.xlu0 %669, %v647
  %v671 = vpop.permute.xlu0 %670
  %674 = vset.pattern.permute.xlu0 0
  %675 = vperm.xlu0 %674, %v648
  %v676 = vpop.permute.xlu0 %675
  %679 = vset.pattern.permute.xlu0 0
  %680 = vperm.xlu0 %679, %v649
  %v681 = vpop.permute.xlu0 %680
  %684 = vset.pattern.permute.xlu0 0
  %685 = vperm.xlu0 %684, %v650
  %v686 = vpop.permute.xlu0 %685
  %689 = vset.pattern.permute.xlu0 0
  %690 = vperm.xlu0 %689, %v651
  %v691 = vpop.permute.xlu0 %690
  %694 = vset.pattern.permute.xlu0 0
  %695 = vperm.xlu0 %694, %v652
  %v696 = vpop.permute.xlu0 %695
  %699 = vset.pattern.permute.xlu0 0
  %700 = vperm.xlu0 %699, %v653
  %v701 = vpop.permute.xlu0 %700
  %704 = vset.pattern.permute.xlu0 0
  %705 = vperm.xlu0 %704, %v654
  %v706 = vpop.permute.xlu0 %705
  %709 = vset.pattern.permute.xlu0 0
  %710 = vperm.xlu0 %709, %v655
  %v711 = vpop.permute.xlu0 %710
  %714 = vset.pattern.permute.xlu0 0
  %715 = vperm.xlu0 %714, %v656
  %v716 = vpop.permute.xlu0 %715
  %719 = vset.pattern.permute.xlu0 0
  %720 = vperm.xlu0 %719, %v657
  %v721 = vpop.permute.xlu0 %720
  %724 = vset.pattern.permute.xlu0 0
  %725 = vperm.xlu0 %724, %v658
  %v726 = vpop.permute.xlu0 %725
  %729 = vset.pattern.permute.xlu0 0
  %730 = vperm.xlu0 %729, %v659
  %v731 = vpop.permute.xlu0 %730
  %734 = vset.pattern.permute.xlu0 0
  %735 = vperm.xlu0 %734, %v660
  %v736 = vpop.permute.xlu0 %735
  %739 = vset.pattern.permute.xlu0 0
  %740 = vperm.xlu0 %739, %v661
  %v741 = vpop.permute.xlu0 %740
  %v743 = vmul.f32 %v630, %v666
  %v744 = vmul.f32 %v631, %v671
  %v745 = vmul.f32 %v632, %v676
  %v746 = vmul.f32 %v633, %v681
  %v747 = vmul.f32 %v634, %v686
  %v748 = vmul.f32 %v635, %v691
  %v749 = vmul.f32 %v636, %v696
  %v750 = vmul.f32 %v637, %v701
  %v751 = vmul.f32 %v638, %v706
  %v752 = vmul.f32 %v639, %v711
  %v753 = vmul.f32 %v640, %v716
  %v754 = vmul.f32 %v641, %v721
  %v755 = vmul.f32 %v642, %v726
  %v756 = vmul.f32 %v643, %v731
  %v757 = vmul.f32 %v644, %v736
  %v758 = vmul.f32 %v645, %v741
  %v759 = vadd.f32 %v743, %v744
  %v760 = vadd.f32 %v759, %v745
  %v761 = vadd.f32 %v760, %v746
  %v762 = vadd.f32 %v761, %v747
  %v763 = vadd.f32 %v762, %v748
  %v764 = vadd.f32 %v763, %v749
  %v765 = vadd.f32 %v764, %v750
  %v766 = vadd.f32 %v765, %v751
  %v767 = vadd.f32 %v766, %v752
  %v768 = vadd.f32 %v767, %v753
  %v769 = vadd.f32 %v768, %v754
  %v770 = vadd.f32 %v769, %v755
  %v771 = vadd.f32 %v770, %v756
  %v772 = vadd.f32 %v771, %v757
  %v773 = vadd.f32 %v772, %v758
  %v774 = vrot.slane %v773, 4
  %v775 = vadd.f32 %v773, %v774
  %v776 = vrot.slane %v775, 2
  %v777 = vadd.f32 %v775, %v776
  %v778 = vrot.slane %v777, 1
  %v779 = vadd.f32 %v777, %v778
  %v780 = vstv %s662
  %v781 = vadd.f32 %v779, %v780
  %782 = vst [vmem:[%s7] sm:$0x1] %v781
  // Predicated region
  $region30: #{deep_nn_forward.1} parent=0 // pred_check
    _
  $region31: #{deep_nn_forward.1} parent=0 // pred_check_branch
    %784 = sbr.rel (0) target = $region33
  $region32: #{deep_nn_forward.1} parent=0 // pred_region
    _
  $region33: #{deep_nn_forward.1} parent=0 // pred_fallthru
    _
  // Predicated region
  $region34: #{deep_nn_forward.1} parent=0 // pred_check
    _
  $region35: #{deep_nn_forward.1} parent=0 // pred_check_branch
    %786 = sbr.rel (0) target = $region37
  $region36: #{deep_nn_forward.1} parent=0 // pred_region
    _
  $region37: #{deep_nn_forward.1} parent=0 // pred_fallthru
    _

// kernel: deep_nn_forward.1
$region0: #{deep_nn_forward.1}
  #allocation0 [shape = 'u32[]', space=smem, size = 0x4, offset = 0x4, fixed_abs, tag = 'smem constant byte address 0x4 - core index']
  #allocation1 [shape = 'u32[144,128]{1,0:T(1,128)}', space=vmem, size = 0x12000, scoped, tag = 'internal scratch']
  #allocation2 [shape = 'f32[1,1]{1,0:T(1,128)S(6)}', space=smem, size = 0x200, scoped, tag = 'scoped memory for deep_nn_forward.1']
  %s0 = inlined_call_operand.vmem [shape: bf16[128,128], index: 0, kind: input, shape index: {}]
  %s1 = inlined_call_operand.vmem [shape: bf16[128,128], index: 1, kind: input, shape index: {}]
  %s2 = inlined_call_operand.vmem [shape: f32[128,1], index: 2, kind: input, shape index: {}]
  %s3 = inlined_call_operand.vmem [shape: bf16[128,128], index: 3, kind: input, shape index: {}]
  %s4 = inlined_call_operand.vmem [shape: f32[128,1], index: 4, kind: input, shape index: {}]
  %s5 = inlined_call_operand.vmem [shape: f32[128,1], index: 5, kind: input, shape index: {}]
  %s6 = inlined_call_operand.<no memory space> [shape: f32[1,1], index: 6, kind: input, shape index: {}]
  %s7 = inlined_call_operand.vmem [shape: f32[1,128], index: 7, kind: output, shape index: {}]
  %s8 = sld [smem:[#allocation0]]
  $region38: #{deep_nn_forward.1} parent=0
    _
  %s10 = ssub.s32 1, %s8
  %s11 = scalar_select 0, %s10, %s8
  %12 = sst [smem:[#allocation2]] %s6
  // Predicated region
  $region2: #{deep_nn_forward.1} parent=0 // pred_check
    _
  $region3: #{deep_nn_forward.1} parent=0 // pred_check_branch
    %14 = sbr.rel (0) target = $region5
  $region4: #{deep_nn_forward.1} parent=0 // pred_region
    _
  $region5: #{deep_nn_forward.1} parent=0 // pred_fallthru
    _
  // Predicated region
  $region6: #{deep_nn_forward.1} parent=0 // pred_check
    _
  $region7: #{deep_nn_forward.1} parent=0 // pred_check_branch
    %16 = sbr.rel (0) target = $region9
  $region8: #{deep_nn_forward.1} parent=0 // pred_region
    _
  $region9: #{deep_nn_forward.1} parent=0 // pred_fallthru
    _
  // Predicated region
  $region10: #{deep_nn_forward.1} parent=0 // pred_check
    _
  $region11: #{deep_nn_forward.1} parent=0 // pred_check_branch
    %18 = sbr.rel (0) target = $region13
  $region12: #{deep_nn_forward.1} parent=0 // pred_region
    _
  $region13: #{deep_nn_forward.1} parent=0 // pred_fallthru
    _
  // Predicated region
  $region14: #{deep_nn_forward.1} parent=0 // pred_check
    _
  $region15: #{deep_nn_forward.1} parent=0 // pred_check_branch
    %20 = sbr.rel (0) target = $region17
  $region16: #{deep_nn_forward.1} parent=0 // pred_region
    _
  $region17: #{deep_nn_forward.1} parent=0 // pred_fallthru
    _
  // Predicated region
  $region18: #{deep_nn_forward.1} parent=0 // pred_check
    _
  $region19: #{deep_nn_forward.1} parent=0 // pred_check_branch
    %22 = sbr.rel (0) target = $region21
  $region20: #{deep_nn_forward.1} parent=0 // pred_region
    _
  $region21: #{deep_nn_forward.1} parent=0 // pred_fallthru
    _
  // Predicated region
  $region22: #{deep_nn_forward.1} parent=0 // pred_check
    _
  $region23: #{deep_nn_forward.1} parent=0 // pred_check_branch
    %24 = sbr.rel (0) target = $region25
  $region24: #{deep_nn_forward.1} parent=0 // pred_region
    _
  $region25: #{deep_nn_forward.1} parent=0 // pred_fallthru
    _
  // Predicated region
  $region26: #{deep_nn_forward.1} parent=0 // pred_check
    _
  $region27: #{deep_nn_forward.1} parent=0 // pred_check_branch
    %26 = sbr.rel (0) target = $region29
  $region28: #{deep_nn_forward.1} parent=0 // pred_region
    _
  $region29: #{deep_nn_forward.1} parent=0 // pred_fallthru
    _
  %v28 = vld [vmem:[%s0] sm:$0xf]
  %v29 = vld [vmem:[%s0 + $0x4] sm:$0xf]
  %v30 = vld [vmem:[%s0 + $0x8] sm:$0xf]
  %v31 = vld [vmem:[%s0 + $0xc] sm:$0xf]
  %v32 = vld [vmem:[%s0 + $0x10] sm:$0xf]
  %v33 = vld [vmem:[%s0 + $0x14] sm:$0xf]
  %v34 = vld [vmem:[%s0 + $0x18] sm:$0xf]
  %v35 = vld [vmem:[%s0 + $0x1c] sm:$0xf]
  %v36 = vld [vmem:[%s0 + $0x20] sm:$0xf]
  %v37 = vld [vmem:[%s0 + $0x24] sm:$0xf]
  %v38 = vld [vmem:[%s0 + $0x28] sm:$0xf]
  %v39 = vld [vmem:[%s0 + $0x2c] sm:$0xf]
  %v40 = vld [vmem:[%s0 + $0x30] sm:$0xf]
  %v41 = vld [vmem:[%s0 + $0x34] sm:$0xf]
  %v42 = vld [vmem:[%s0 + $0x38] sm:$0xf]
  %v43 = vld [vmem:[%s0 + $0x3c] sm:$0xf]
  %v44 = vld [vmem:[%s1] sm:$0xf]
  %v45 = vld [vmem:[%s1 + $0x4] sm:$0xf]
  %v46 = vld [vmem:[%s1 + $0x8] sm:$0xf]
  %v47 = vld [vmem:[%s1 + $0xc] sm:$0xf]
  %v48 = vld [vmem:[%s1 + $0x10] sm:$0xf]
  %v49 = vld [vmem:[%s1 + $0x14] sm:$0xf]
  %v50 = vld [vmem:[%s1 + $0x18] sm:$0xf]
  %v51 = vld [vmem:[%s1 + $0x1c] sm:$0xf]
  %v52 = vld [vmem:[%s1 + $0x20] sm:$0xf]
  %v53 = vld [vmem:[%s1 + $0x24] sm:$0xf]
  %v54 = vld [vmem:[%s1 + $0x28] sm:$0xf]
  %v55 = vld [vmem:[%s1 + $0x2c] sm:$0xf]
  %v56 = vld [vmem:[%s1 + $0x30] sm:$0xf]
  %v57 = vld [vmem:[%s1 + $0x34] sm:$0xf]
  %v58 = vld [vmem:[%s1 + $0x38] sm:$0xf]
  %v59 = vld [vmem:[%s1 + $0x3c] sm:$0xf]
  %v60 = vld [vmem:[%s2] sm:$0xff]
  %v61 = vld [vmem:[%s2 + $0x8] sm:$0xff]
  %v62 = vld [vmem:[%s2 + $0x10] sm:$0xff]
  %v63 = vld [vmem:[%s2 + $0x18] sm:$0xff]
  %v64 = vld [vmem:[%s2 + $0x20] sm:$0xff]
  %v65 = vld [vmem:[%s2 + $0x28] sm:$0xff]
  %v66 = vld [vmem:[%s2 + $0x30] sm:$0xff]
  %v67 = vld [vmem:[%s2 + $0x38] sm:$0xff]
  %v68 = vld [vmem:[%s2 + $0x40] sm:$0xff]
  %v69 = vld [vmem:[%s2 + $0x48] sm:$0xff]
  %v70 = vld [vmem:[%s2 + $0x50] sm:$0xff]
  %v71 = vld [vmem:[%s2 + $0x58] sm:$0xff]
  %v72 = vld [vmem:[%s2 + $0x60] sm:$0xff]
  %v73 = vld [vmem:[%s2 + $0x68] sm:$0xff]
  %v74 = vld [vmem:[%s2 + $0x70] sm:$0xff]
  %v75 = vld [vmem:[%s2 + $0x78] sm:$0xff]
  %77 = vset.pattern.permute.xlu0 0
  %78 = vperm.xlu0 %77, %v60
  %v79 = vpop.permute.xlu0 %78
  %82 = vset.pattern.permute.xlu0 0
  %83 = vperm.xlu0 %82, %v61
  %v84 = vpop.permute.xlu0 %83
  %87 = vset.pattern.permute.xlu0 0
  %88 = vperm.xlu0 %87, %v62
  %v89 = vpop.permute.xlu0 %88
  %92 = vset.pattern.permute.xlu0 0
  %93 = vperm.xlu0 %92, %v63
  %v94 = vpop.permute.xlu0 %93
  %97 = vset.pattern.permute.xlu0 0
  %98 = vperm.xlu0 %97, %v64
  %v99 = vpop.permute.xlu0 %98
  %102 = vset.pattern.permute.xlu0 0
  %103 = vperm.xlu0 %102, %v65
  %v104 = vpop.permute.xlu0 %103
  %107 = vset.pattern.permute.xlu0 0
  %108 = vperm.xlu0 %107, %v66
  %v109 = vpop.permute.xlu0 %108
  %112 = vset.pattern.permute.xlu0 0
  %113 = vperm.xlu0 %112, %v67
  %v114 = vpop.permute.xlu0 %113
  %117 = vset.pattern.permute.xlu0 0
  %118 = vperm.xlu0 %117, %v68
  %v119 = vpop.permute.xlu0 %118
  %122 = vset.pattern.permute.xlu0 0
  %123 = vperm.xlu0 %122, %v69
  %v124 = vpop.permute.xlu0 %123
  %127 = vset.pattern.permute.xlu0 0
  %128 = vperm.xlu0 %127, %v70
  %v129 = vpop.permute.xlu0 %128
  %132 = vset.pattern.permute.xlu0 0
  %133 = vperm.xlu0 %132, %v71
  %v134 = vpop.permute.xlu0 %133
  %137 = vset.pattern.permute.xlu0 0
  %138 = vperm.xlu0 %137, %v72
  %v139 = vpop.permute.xlu0 %138
  %142 = vset.pattern.permute.xlu0 0
  %143 = vperm.xlu0 %142, %v73
  %v144 = vpop.permute.xlu0 %143
  %147 = vset.pattern.permute.xlu0 0
  %148 = vperm.xlu0 %147, %v74
  %v149 = vpop.permute.xlu0 %148
  %152 = vset.pattern.permute.xlu0 0
  %153 = vperm.xlu0 %152, %v75
  %v154 = vpop.permute.xlu0 %153
  %v172 = vunpack.c.l.b16 %v44
  %v173 = vunpack.c.l.b16 %v45
  %v174 = vunpack.c.l.b16 %v46
  %v175 = vunpack.c.l.b16 %v47
  %v176 = vunpack.c.l.b16 %v48
  %v177 = vunpack.c.l.b16 %v49
  %v178 = vunpack.c.l.b16 %v50
  %v179 = vunpack.c.l.b16 %v51
  %v180 = vunpack.c.l.b16 %v52
  %v181 = vunpack.c.l.b16 %v53
  %v182 = vunpack.c.l.b16 %v54
  %v183 = vunpack.c.l.b16 %v55
  %v184 = vunpack.c.l.b16 %v56
  %v185 = vunpack.c.l.b16 %v57
  %v186 = vunpack.c.l.b16 %v58
  %v187 = vunpack.c.l.b16 %v59
  %v188 = vpack.c.b16 %v173, %v172
  %v189 = vpack.c.b16 %v175, %v174
  %v190 = vpack.c.b16 %v177, %v176
  %v191 = vpack.c.b16 %v179, %v178
  %v192 = vpack.c.b16 %v181, %v180
  %v193 = vpack.c.b16 %v183, %v182
  %v194 = vpack.c.b16 %v185, %v184
  %v195 = vpack.c.b16 %v187, %v186
  %v220 = vunpack.c.l.b16 %v28
  %v221 = vunpack.c.l.b16 %v29
  %v222 = vunpack.c.l.b16 %v30
  %v223 = vunpack.c.l.b16 %v31
  %v224 = vunpack.c.l.b16 %v32
  %v225 = vunpack.c.l.b16 %v33
  %v226 = vunpack.c.l.b16 %v34
  %v227 = vunpack.c.l.b16 %v35
  %v228 = vunpack.c.l.b16 %v36
  %v229 = vunpack.c.l.b16 %v37
  %v230 = vunpack.c.l.b16 %v38
  %v231 = vunpack.c.l.b16 %v39
  %v232 = vunpack.c.l.b16 %v40
  %v233 = vunpack.c.l.b16 %v41
  %v234 = vunpack.c.l.b16 %v42
  %v235 = vunpack.c.l.b16 %v43
  %v236 = vpack.c.b16 %v221, %v220
  %v237 = vpack.c.b16 %v223, %v222
  %v238 = vpack.c.b16 %v225, %v224
  %v239 = vpack.c.b16 %v227, %v226
  %v240 = vpack.c.b16 %v229, %v228
  %v241 = vpack.c.b16 %v231, %v230
  %v242 = vpack.c.b16 %v233, %v232
  %v243 = vpack.c.b16 %v235, %v234
  %252 = vmatprep.subr.bf16.mxu0 0
  %253 = vmatpush1.bf16.msra.mxu0 %v236
  %254 = vmatprep.subr.bf16.mxu0 0
  %255 = vmatpush1.bf16.msra.mxu0 %v237
  %256 = vmatprep.subr.bf16.mxu0 0
  %257 = vmatpush1.bf16.msra.mxu0 %v238
  %258 = vmatprep.subr.bf16.mxu0 0
  %259 = vmatpush1.bf16.msra.mxu0 %v239
  %260 = vmatprep.subr.bf16.mxu0 0
  %261 = vmatpush1.bf16.msra.mxu0 %v240
  %262 = vmatprep.subr.bf16.mxu0 0
  %263 = vmatpush1.bf16.msra.mxu0 %v241
  %264 = vmatprep.subr.bf16.mxu0 0
  %265 = vmatpush1.bf16.msra.mxu0 %v242
  %266 = vmatprep.subr.bf16.mxu0 0
  %267 = vmatpush1.bf16.msra.mxu0 %v243
  %268 = vmatprep.subr.bf16.mxu0 0
  %269 = vmatpush1.bf16.msra.mxu0 0
  %270 = vmatprep.subr.bf16.mxu0 0
  %271 = vmatpush1.bf16.msra.mxu0 0
  %272 = vmatprep.subr.bf16.mxu0 0
  %273 = vmatpush1.bf16.msra.mxu0 0
  %274 = vmatprep.subr.bf16.mxu0 0
  %275 = vmatpush1.bf16.msra.mxu0 0
  %276 = vmatprep.subr.bf16.mxu0 0
  %277 = vmatpush1.bf16.msra.mxu0 0
  %278 = vmatprep.subr.bf16.mxu0 0
  %279 = vmatpush1.bf16.msra.mxu0 0
  %280 = vmatprep.subr.bf16.mxu0 0
  %281 = vmatpush1.bf16.msra.mxu0 0
  %282 = vmatprep.subr.bf16.mxu0 0
  %283 = vmatpush1.bf16.msra.mxu0 0
  %284 = vmatprep.mubr.bf16.mxu0 0
  %285 = vmatmul.mubr.bf16.gmra.mrb[0].mxu0 %v188
  %v286 = vpop.f32.mrb[0].mxu0
  %v287 = vadd.f32 %v79, %v286
  %v288 = vpop.f32.mrb[0].mxu0
  %v289 = vpop.f32.mrb[0].mxu0
  %v290 = vadd.f32 %v84, %v289
  %v291 = vpop.f32.mrb[0].mxu0
  %292 = vmatprep.mubr.bf16.mxu0 0
  %293 = vmatmul.mubr.bf16.gmra.mrb[0].mxu0 %v189
  %v294 = vpop.f32.mrb[0].mxu0
  %v295 = vadd.f32 %v89, %v294
  %v296 = vpop.f32.mrb[0].mxu0
  %v297 = vpop.f32.mrb[0].mxu0
  %v298 = vadd.f32 %v94, %v297
  %v299 = vpop.f32.mrb[0].mxu0
  %300 = vmatprep.mubr.bf16.mxu0 0
  %301 = vmatmul.mubr.bf16.gmra.mrb[0].mxu0 %v190
  %v302 = vpop.f32.mrb[0].mxu0
  %v303 = vadd.f32 %v99, %v302
  %v304 = vpop.f32.mrb[0].mxu0
  %v305 = vpop.f32.mrb[0].mxu0
  %v306 = vadd.f32 %v104, %v305
  %v307 = vpop.f32.mrb[0].mxu0
  %308 = vmatprep.mubr.bf16.mxu0 0
  %309 = vmatmul.mubr.bf16.gmra.mrb[0].mxu0 %v191
  %v310 = vpop.f32.mrb[0].mxu0
  %v311 = vadd.f32 %v109, %v310
  %v312 = vpop.f32.mrb[0].mxu0
  %v313 = vpop.f32.mrb[0].mxu0
  %v314 = vadd.f32 %v114, %v313
  %v315 = vpop.f32.mrb[0].mxu0
  %316 = vmatprep.mubr.bf16.mxu0 0
  %317 = vmatmul.mubr.bf16.gmra.mrb[0].mxu0 %v192
  %v318 = vpop.f32.mrb[0].mxu0
  %v319 = vadd.f32 %v119, %v318
  %v320 = vpop.f32.mrb[0].mxu0
  %v321 = vpop.f32.mrb[0].mxu0
  %v322 = vadd.f32 %v124, %v321
  %v323 = vpop.f32.mrb[0].mxu0
  %324 = vmatprep.mubr.bf16.mxu0 0
  %325 = vmatmul.mubr.bf16.gmra.mrb[0].mxu0 %v193
  %v326 = vpop.f32.mrb[0].mxu0
  %v327 = vadd.f32 %v129, %v326
  %v328 = vpop.f32.mrb[0].mxu0
  %v329 = vpop.f32.mrb[0].mxu0
  %v330 = vadd.f32 %v134, %v329
  %v331 = vpop.f32.mrb[0].mxu0
  %332 = vmatprep.mubr.bf16.mxu0 0
  %333 = vmatmul.mubr.bf16.gmra.mrb[0].mxu0 %v194
  %v334 = vpop.f32.mrb[0].mxu0
  %v335 = vadd.f32 %v139, %v334
  %v336 = vpop.f32.mrb[0].mxu0
  %v337 = vpop.f32.mrb[0].mxu0
  %v338 = vadd.f32 %v144, %v337
  %v339 = vpop.f32.mrb[0].mxu0
  %340 = vmatprep.mubr.bf16.mxu0 0
  %341 = vmatmul.mubr.bf16.gmra.mrb[0].mxu0 %v195
  %v342 = vpop.f32.mrb[0].mxu0
  %v343 = vadd.f32 %v149, %v342
  %v344 = vpop.f32.mrb[0].mxu0
  %v345 = vpop.f32.mrb[0].mxu0
  %v346 = vadd.f32 %v154, %v345
  %v347 = vpop.f32.mrb[0].mxu0
  %348 = vdwg.mxu0
  %v349 = vmax.f32 %v287, 0.0
  %v350 = vmax.f32 %v290, 0.0
  %v351 = vmax.f32 %v295, 0.0
  %v352 = vmax.f32 %v298, 0.0
  %v353 = vmax.f32 %v303, 0.0
  %v354 = vmax.f32 %v306, 0.0
  %v355 = vmax.f32 %v311, 0.0
  %v356 = vmax.f32 %v314, 0.0
  %v357 = vmax.f32 %v319, 0.0
  %v358 = vmax.f32 %v322, 0.0
  %v359 = vmax.f32 %v327, 0.0
  %v360 = vmax.f32 %v330, 0.0
  %v361 = vmax.f32 %v335, 0.0
  %v362 = vmax.f32 %v338, 0.0
  %v363 = vmax.f32 %v343, 0.0
  %v364 = vmax.f32 %v346, 0.0
  %v365 = vpack.c.bf16 %v350, %v349
  %v366 = vpack.c.bf16 %v352, %v351
  %v367 = vpack.c.bf16 %v354, %v353
  %v368 = vpack.c.bf16 %v356, %v355
  %v369 = vpack.c.bf16 %v358, %v357
  %v370 = vpack.c.bf16 %v360, %v359
  %v371 = vpack.c.bf16 %v362, %v361
  %v372 = vpack.c.bf16 %v364, %v363
  %v373 = vld [vmem:[%s3] sm:$0xf]
  %v374 = vld [vmem:[%s3 + $0x4] sm:$0xf]
  %v375 = vld [vmem:[%s3 + $0x8] sm:$0xf]
  %v376 = vld [vmem:[%s3 + $0xc] sm:$0xf]
  %v377 = vld [vmem:[%s3 + $0x10] sm:$0xf]
  %v378 = vld [vmem:[%s3 + $0x14] sm:$0xf]
  %v379 = vld [vmem:[%s3 + $0x18] sm:$0xf]
  %v380 = vld [vmem:[%s3 + $0x1c] sm:$0xf]
  %v381 = vld [vmem:[%s3 + $0x20] sm:$0xf]
  %v382 = vld [vmem:[%s3 + $0x24] sm:$0xf]
  %v383 = vld [vmem:[%s3 + $0x28] sm:$0xf]
  %v384 = vld [vmem:[%s3 + $0x2c] sm:$0xf]
  %v385 = vld [vmem:[%s3 + $0x30] sm:$0xf]
  %v386 = vld [vmem:[%s3 + $0x34] sm:$0xf]
  %v387 = vld [vmem:[%s3 + $0x38] sm:$0xf]
  %v388 = vld [vmem:[%s3 + $0x3c] sm:$0xf]
  %v389 = vld [vmem:[%s4] sm:$0xff]
  %v390 = vld [vmem:[%s4 + $0x8] sm:$0xff]
  %v391 = vld [vmem:[%s4 + $0x10] sm:$0xff]
  %v392 = vld [vmem:[%s4 + $0x18] sm:$0xff]
  %v393 = vld [vmem:[%s4 + $0x20] sm:$0xff]
  %v394 = vld [vmem:[%s4 + $0x28] sm:$0xff]
  %v395 = vld [vmem:[%s4 + $0x30] sm:$0xff]
  %v396 = vld [vmem:[%s4 + $0x38] sm:$0xff]
  %v397 = vld [vmem:[%s4 + $0x40] sm:$0xff]
  %v398 = vld [vmem:[%s4 + $0x48] sm:$0xff]
  %v399 = vld [vmem:[%s4 + $0x50] sm:$0xff]
  %v400 = vld [vmem:[%s4 + $0x58] sm:$0xff]
  %v401 = vld [vmem:[%s4 + $0x60] sm:$0xff]
  %v402 = vld [vmem:[%s4 + $0x68] sm:$0xff]
  %v403 = vld [vmem:[%s4 + $0x70] sm:$0xff]
  %v404 = vld [vmem:[%s4 + $0x78] sm:$0xff]
  %406 = vset.pattern.permute.xlu0 0
  %407 = vperm.xlu0 %406, %v389
  %v408 = vpop.permute.xlu0 %407
  %411 = vset.pattern.permute.xlu0 0
  %412 = vperm.xlu0 %411, %v390
  %v413 = vpop.permute.xlu0 %412
  %416 = vset.pattern.permute.xlu0 0
  %417 = vperm.xlu0 %416, %v391
  %v418 = vpop.permute.xlu0 %417
  %421 = vset.pattern.permute.xlu0 0
  %422 = vperm.xlu0 %421, %v392
  %v423 = vpop.permute.xlu0 %422
  %426 = vset.pattern.permute.xlu0 0
  %427 = vperm.xlu0 %426, %v393
  %v428 = vpop.permute.xlu0 %427
  %431 = vset.pattern.permute.xlu0 0
  %432 = vperm.xlu0 %431, %v394
  %v433 = vpop.permute.xlu0 %432
  %436 = vset.pattern.permute.xlu0 0
  %437 = vperm.xlu0 %436, %v395
  %v438 = vpop.permute.xlu0 %437
  %441 = vset.pattern.permute.xlu0 0
  %442 = vperm.xlu0 %441, %v396
  %v443 = vpop.permute.xlu0 %442
  %446 = vset.pattern.permute.xlu0 0
  %447 = vperm.xlu0 %446, %v397
  %v448 = vpop.permute.xlu0 %447
  %451 = vset.pattern.permute.xlu0 0
  %452 = vperm.xlu0 %451, %v398
  %v453 = vpop.permute.xlu0 %452
  %456 = vset.pattern.permute.xlu0 0
  %457 = vperm.xlu0 %456, %v399
  %v458 = vpop.permute.xlu0 %457
  %461 = vset.pattern.permute.xlu0 0
  %462 = vperm.xlu0 %461, %v400
  %v463 = vpop.permute.xlu0 %462
  %466 = vset.pattern.permute.xlu0 0
  %467 = vperm.xlu0 %466, %v401
  %v468 = vpop.permute.xlu0 %467
  %471 = vset.pattern.permute.xlu0 0
  %472 = vperm.xlu0 %471, %v402
  %v473 = vpop.permute.xlu0 %472
  %476 = vset.pattern.permute.xlu0 0
  %477 = vperm.xlu0 %476, %v403
  %v478 = vpop.permute.xlu0 %477
  %481 = vset.pattern.permute.xlu0 0
  %482 = vperm.xlu0 %481, %v404
  %v483 = vpop.permute.xlu0 %482
  %v501 = vunpack.c.l.b16 %v373
  %v502 = vunpack.c.l.b16 %v374
  %v503 = vunpack.c.l.b16 %v375
  %v504 = vunpack.c.l.b16 %v376
  %v505 = vunpack.c.l.b16 %v377
  %v506 = vunpack.c.l.b16 %v378
  %v507 = vunpack.c.l.b16 %v379
  %v508 = vunpack.c.l.b16 %v380
  %v509 = vunpack.c.l.b16 %v381
  %v510 = vunpack.c.l.b16 %v382
  %v511 = vunpack.c.l.b16 %v383
  %v512 = vunpack.c.l.b16 %v384
  %v513 = vunpack.c.l.b16 %v385
  %v514 = vunpack.c.l.b16 %v386
  %v515 = vunpack.c.l.b16 %v387
  %v516 = vunpack.c.l.b16 %v388
  %v517 = vpack.c.b16 %v502, %v501
  %v518 = vpack.c.b16 %v504, %v503
  %v519 = vpack.c.b16 %v506, %v505
  %v520 = vpack.c.b16 %v508, %v507
  %v521 = vpack.c.b16 %v510, %v509
  %v522 = vpack.c.b16 %v512, %v511
  %v523 = vpack.c.b16 %v514, %v513
  %v524 = vpack.c.b16 %v516, %v515
  %533 = vmatprep.subr.bf16.mxu0 0
  %534 = vmatpush1.bf16.msra.mxu0 %v365
  %535 = vmatprep.subr.bf16.mxu0 0
  %536 = vmatpush1.bf16.msra.mxu0 %v366
  %537 = vmatprep.subr.bf16.mxu0 0
  %538 = vmatpush1.bf16.msra.mxu0 %v367
  %539 = vmatprep.subr.bf16.mxu0 0
  %540 = vmatpush1.bf16.msra.mxu0 %v368
  %541 = vmatprep.subr.bf16.mxu0 0
  %542 = vmatpush1.bf16.msra.mxu0 %v369
  %543 = vmatprep.subr.bf16.mxu0 0
  %544 = vmatpush1.bf16.msra.mxu0 %v370
  %545 = vmatprep.subr.bf16.mxu0 0
  %546 = vmatpush1.bf16.msra.mxu0 %v371
  %547 = vmatprep.subr.bf16.mxu0 0
  %548 = vmatpush1.bf16.msra.mxu0 %v372
  %549 = vmatprep.subr.bf16.mxu0 0
  %550 = vmatpush1.bf16.msra.mxu0 0
  %551 = vmatprep.subr.bf16.mxu0 0
  %552 = vmatpush1.bf16.msra.mxu0 0
  %553 = vmatprep.subr.bf16.mxu0 0
  %554 = vmatpush1.bf16.msra.mxu0 0
  %555 = vmatprep.subr.bf16.mxu0 0
  %556 = vmatpush1.bf16.msra.mxu0 0
  %557 = vmatprep.subr.bf16.mxu0 0
  %558 = vmatpush1.bf16.msra.mxu0 0
  %559 = vmatprep.subr.bf16.mxu0 0
  %560 = vmatpush1.bf16.msra.mxu0 0
  %561 = vmatprep.subr.bf16.mxu0 0
  %562 = vmatpush1.bf16.msra.mxu0 0
  %563 = vmatprep.subr.bf16.mxu0 0
  %564 = vmatpush1.bf16.msra.mxu0 0
  %565 = vmatprep.mubr.bf16.mxu0 0
  %566 = vmatmul.mubr.bf16.gmra.mrb[0].mxu0 %v517
  %v567 = vpop.f32.mrb[0].mxu0
  %v568 = vadd.f32 %v408, %v567
  %v569 = vpop.f32.mrb[0].mxu0
  %v570 = vpop.f32.mrb[0].mxu0
  %v571 = vadd.f32 %v413, %v570
  %v572 = vpop.f32.mrb[0].mxu0
  %573 = vmatprep.mubr.bf16.mxu0 0
  %574 = vmatmul.mubr.bf16.gmra.mrb[0].mxu0 %v518
  %v575 = vpop.f32.mrb[0].mxu0
  %v576 = vadd.f32 %v418, %v575
  %v577 = vpop.f32.mrb[0].mxu0
  %v578 = vpop.f32.mrb[0].mxu0
  %v579 = vadd.f32 %v423, %v578
  %v580 = vpop.f32.mrb[0].mxu0
  %581 = vmatprep.mubr.bf16.mxu0 0
  %582 = vmatmul.mubr.bf16.gmra.mrb[0].mxu0 %v519
  %v583 = vpop.f32.mrb[0].mxu0
  %v584 = vadd.f32 %v428, %v583
  %v585 = vpop.f32.mrb[0].mxu0
  %v586 = vpop.f32.mrb[0].mxu0
  %v587 = vadd.f32 %v433, %v586
  %v588 = vpop.f32.mrb[0].mxu0
  %589 = vmatprep.mubr.bf16.mxu0 0
  %590 = vmatmul.mubr.bf16.gmra.mrb[0].mxu0 %v520
  %v591 = vpop.f32.mrb[0].mxu0
  %v592 = vadd.f32 %v438, %v591
  %v593 = vpop.f32.mrb[0].mxu0
  %v594 = vpop.f32.mrb[0].mxu0
  %v595 = vadd.f32 %v443, %v594
  %v596 = vpop.f32.mrb[0].mxu0
  %597 = vmatprep.mubr.bf16.mxu0 0
  %598 = vmatmul.mubr.bf16.gmra.mrb[0].mxu0 %v521
  %v599 = vpop.f32.mrb[0].mxu0
  %v600 = vadd.f32 %v448, %v599
  %v601 = vpop.f32.mrb[0].mxu0
  %v602 = vpop.f32.mrb[0].mxu0
  %v603 = vadd.f32 %v453, %v602
  %v604 = vpop.f32.mrb[0].mxu0
  %605 = vmatprep.mubr.bf16.mxu0 0
  %606 = vmatmul.mubr.bf16.gmra.mrb[0].mxu0 %v522
  %v607 = vpop.f32.mrb[0].mxu0
  %v608 = vadd.f32 %v458, %v607
  %v609 = vpop.f32.mrb[0].mxu0
  %v610 = vpop.f32.mrb[0].mxu0
  %v611 = vadd.f32 %v463, %v610
  %v612 = vpop.f32.mrb[0].mxu0
  %613 = vmatprep.mubr.bf16.mxu0 0
  %614 = vmatmul.mubr.bf16.gmra.mrb[0].mxu0 %v523
  %v615 = vpop.f32.mrb[0].mxu0
  %v616 = vadd.f32 %v468, %v615
  %v617 = vpop.f32.mrb[0].mxu0
  %v618 = vpop.f32.mrb[0].mxu0
  %v619 = vadd.f32 %v473, %v618
  %v620 = vpop.f32.mrb[0].mxu0
  %621 = vmatprep.mubr.bf16.mxu0 0
  %622 = vmatmul.mubr.bf16.gmra.mrb[0].mxu0 %v524
  %v623 = vpop.f32.mrb[0].mxu0
  %v624 = vadd.f32 %v478, %v623
  %v625 = vpop.f32.mrb[0].mxu0
  %v626 = vpop.f32.mrb[0].mxu0
  %v627 = vadd.f32 %v483, %v626
  %v628 = vpop.f32.mrb[0].mxu0
  %629 = vdwg.mxu0
  %v630 = vmax.f32 %v568, 0.0
  %v631 = vmax.f32 %v571, 0.0
  %v632 = vmax.f32 %v576, 0.0
  %v633 = vmax.f32 %v579, 0.0
  %v634 = vmax.f32 %v584, 0.0
  %v635 = vmax.f32 %v587, 0.0
  %v636 = vmax.f32 %v592, 0.0
  %v637 = vmax.f32 %v595, 0.0
  %v638 = vmax.f32 %v600, 0.0
  %v639 = vmax.f32 %v603, 0.0
  %v640 = vmax.f32 %v608, 0.0
  %v641 = vmax.f32 %v611, 0.0
  %v642 = vmax.f32 %v616, 0.0
  %v643 = vmax.f32 %v619, 0.0
  %v644 = vmax.f32 %v624, 0.0
  %v645 = vmax.f32 %v627, 0.0
  %v646 = vld [vmem:[%s5] sm:$0xff]
  %v647 = vld [vmem:[%s5 + $0x8] sm:$0xff]
  %v648 = vld [vmem:[%s5 + $0x10] sm:$0xff]
  %v649 = vld [vmem:[%s5 + $0x18] sm:$0xff]
  %v650 = vld [vmem:[%s5 + $0x20] sm:$0xff]
  %v651 = vld [vmem:[%s5 + $0x28] sm:$0xff]
  %v652 = vld [vmem:[%s5 + $0x30] sm:$0xff]
  %v653 = vld [vmem:[%s5 + $0x38] sm:$0xff]
  %v654 = vld [vmem:[%s5 + $0x40] sm:$0xff]
  %v655 = vld [vmem:[%s5 + $0x48] sm:$0xff]
  %v656 = vld [vmem:[%s5 + $0x50] sm:$0xff]
  %v657 = vld [vmem:[%s5 + $0x58] sm:$0xff]
  %v658 = vld [vmem:[%s5 + $0x60] sm:$0xff]
  %v659 = vld [vmem:[%s5 + $0x68] sm:$0xff]
  %v660 = vld [vmem:[%s5 + $0x70] sm:$0xff]
  %v661 = vld [vmem:[%s5 + $0x78] sm:$0xff]
  %s662 = sld [smem:[#allocation2]]
  %664 = vset.pattern.permute.xlu0 0
  %665 = vperm.xlu0 %664, %v646
  %v666 = vpop.permute.xlu0 %665
  %669 = vset.pattern.permute.xlu0 0
  %670 = vperm.xlu0 %669, %v647
  %v671 = vpop.permute.xlu0 %670
  %674 = vset.pattern.permute.xlu0 0
  %675 = vperm.xlu0 %674, %v648
  %v676 = vpop.permute.xlu0 %675
  %679 = vset.pattern.permute.xlu0 0
  %680 = vperm.xlu0 %679, %v649
  %v681 = vpop.permute.xlu0 %680
  %684 = vset.pattern.permute.xlu0 0
  %685 = vperm.xlu0 %684, %v650
  %v686 = vpop.permute.xlu0 %685
  %689 = vset.pattern.permute.xlu0 0
  %690 = vperm.xlu0 %689, %v651
  %v691 = vpop.permute.xlu0 %690
  %694 = vset.pattern.permute.xlu0 0
  %695 = vperm.xlu0 %694, %v652
  %v696 = vpop.permute.xlu0 %695
  %699 = vset.pattern.permute.xlu0 0
  %700 = vperm.xlu0 %699, %v653
  %v701 = vpop.permute.xlu0 %700
  %704 = vset.pattern.permute.xlu0 0
  %705 = vperm.xlu0 %704, %v654
  %v706 = vpop.permute.xlu0 %705
  %709 = vset.pattern.permute.xlu0 0
  %710 = vperm.xlu0 %709, %v655
  %v711 = vpop.permute.xlu0 %710
  %714 = vset.pattern.permute.xlu0 0
  %715 = vperm.xlu0 %714, %v656
  %v716 = vpop.permute.xlu0 %715
  %719 = vset.pattern.permute.xlu0 0
  %720 = vperm.xlu0 %719, %v657
  %v721 = vpop.permute.xlu0 %720
  %724 = vset.pattern.permute.xlu0 0
  %725 = vperm.xlu0 %724, %v658
  %v726 = vpop.permute.xlu0 %725
  %729 = vset.pattern.permute.xlu0 0
  %730 = vperm.xlu0 %729, %v659
  %v731 = vpop.permute.xlu0 %730
  %734 = vset.pattern.permute.xlu0 0
  %735 = vperm.xlu0 %734, %v660
  %v736 = vpop.permute.xlu0 %735
  %739 = vset.pattern.permute.xlu0 0
  %740 = vperm.xlu0 %739, %v661
  %v741 = vpop.permute.xlu0 %740
  %v743 = vmul.f32 %v630, %v666
  %v744 = vmul.f32 %v631, %v671
  %v745 = vmul.f32 %v632, %v676
  %v746 = vmul.f32 %v633, %v681
  %v747 = vmul.f32 %v634, %v686
  %v748 = vmul.f32 %v635, %v691
  %v749 = vmul.f32 %v636, %v696
  %v750 = vmul.f32 %v637, %v701
  %v751 = vmul.f32 %v638, %v706
  %v752 = vmul.f32 %v639, %v711
  %v753 = vmul.f32 %v640, %v716
  %v754 = vmul.f32 %v641, %v721
  %v755 = vmul.f32 %v642, %v726
  %v756 = vmul.f32 %v643, %v731
  %v757 = vmul.f32 %v644, %v736
  %v758 = vmul.f32 %v645, %v741
  %v759 = vadd.f32 %v743, %v744
  %v760 = vadd.f32 %v759, %v745
  %v761 = vadd.f32 %v760, %v746
  %v762 = vadd.f32 %v761, %v747
  %v763 = vadd.f32 %v762, %v748
  %v764 = vadd.f32 %v763, %v749
  %v765 = vadd.f32 %v764, %v750
  %v766 = vadd.f32 %v765, %v751
  %v767 = vadd.f32 %v766, %v752
  %v768 = vadd.f32 %v767, %v753
  %v769 = vadd.f32 %v768, %v754
  %v770 = vadd.f32 %v769, %v755
  %v771 = vadd.f32 %v770, %v756
  %v772 = vadd.f32 %v771, %v757
  %v773 = vadd.f32 %v772, %v758
  %v774 = vrot.slane %v773, 4
  %v775 = vadd.f32 %v773, %v774
  %v776 = vrot.slane %v775, 2
  %v777 = vadd.f32 %v775, %v776
  %v778 = vrot.slane %v777, 1
  %v779 = vadd.f32 %v777, %v778
  %v780 = vstv %s662
  %v781 = vadd.f32 %v779, %v780
  %782 = vst [vmem:[%s7] sm:$0x1] %v781
  // Predicated region
  $region30: #{deep_nn_forward.1} parent=0 // pred_check
    _
  $region31: #{deep_nn_forward.1} parent=0 // pred_check_branch
    %784 = sbr.rel (0) target = $region33
  $region32: #{deep_nn_forward.1} parent=0 // pred_region
    _
  $region33: #{deep_nn_forward.1} parent=0 // pred_fallthru
    _
  // Predicated region
  $region34: #{deep_nn_forward.1} parent=0 // pred_check
    _
  $region35: #{deep_nn_forward.1} parent=0 // pred_check_branch
    %786 = sbr.rel (0) target = $region37
  $region36: #{deep_nn_forward.1} parent=0 // pred_region
    _
  $region37: #{deep_nn_forward.1} parent=0 // pred_fallthru
    _

</llo_original>
